<compile_context>
chip_gen: v6e
topology: v6e:2x2x1
jax: 0.10.0
libtpu: 0.0.40
codegen_flags: <defaults>
</compile_context>

<pallas_src>
import jax
import jax.numpy as jnp
from jax import lax
from jax.experimental import pallas as pl
from jax.experimental.pallas import tpu as pltpu


def _make_bottleneck_kernel(H, W):
    def kernel(x_ref, s1_ref, b1_ref, w1_ref, b2_ref, w2_ref, p_ref, m_ref, o_ref):
        # x_ref : (Cin, LANES)       LANES = batch_block*H*W (batch stacked on lanes)
        # s1/b1 : (Cin, 1)           folded BN1 scale / bias
        # w1    : (C4, Cin)          1x1 conv weight with BN2 scale pre-folded in
        # b2    : (C4, 1)            folded BN2 bias
        # w2    : (9, G+Cin, C4)     3x3 conv weight, tap-major, bottom Cin rows zero
        # p_ref : (G+Cin, Cin)       pass-through embedding (identity in bottom rows)
        # m_ref : (9, 1, LANES)      precomputed 0/1 border masks per tap
        # o_ref : (G+Cin, LANES)     concat([conv2_out, x], channel)
        LANES = x_ref.shape[1]

        x = x_ref[...]                                               # (Cin, LANES)

        # ---- BN1 + ReLU ----
        h1 = jnp.maximum(x * s1_ref[...] + b1_ref[...], 0.0)

        # ---- 1x1 conv (BN2 scale folded into w1) + BN2 bias + ReLU ----
        c1 = jnp.dot(w1_ref[...], h1, preferred_element_type=jnp.float32)
        h2 = jnp.maximum(c1 + b2_ref[...], 0.0)                      # (C4, LANES)

        # ---- pass-through channels as a tiny dot (exact 0/1 weights -> exact copy)
        acc = jnp.dot(p_ref[...], x, preferred_element_type=jnp.float32)  # (G+Cin, LANES)

        # ---- 3x3 conv, padding=1: nine accumulating tap dots (no im2col scratch) ----
        # tap(ky,kx)[c, p] = h2[c, p + (ky-1)*W + (kx-1)], zeroed outside the image by
        # the precomputed border mask.  The lane-axis roll only wraps across image /
        # batch boundaries at positions the mask zeroes, so batch stacking is safe.
        for ky in range(3):
            for kx in range(3):
                t = ky * 3 + kx
                d = (ky - 1) * W + (kx - 1)
                if d == 0:
                    tap = h2                                         # center: no roll, no mask
                else:
                    tap = pltpu.roll(h2, shift=(-d) % LANES, axis=1) * m_ref[t]
                acc = acc + jnp.dot(w2_ref[t], tap,
                                    preferred_element_type=jnp.float32)

        # ---- single unmasked full-tile store ----
        o_ref[...] = acc.astype(o_ref.dtype)
        # Dropout(0.2) in eval mode = identity.

    return kernel


def _border_masks(H, W, batch_block):
    """(9, 1, batch_block*H*W) f32 0/1 masks for the nine 3x3 taps (padding=1)."""
    HW = H * W
    p = jnp.arange(HW, dtype=jnp.int32)
    hh, ww = p // W, p % W
    rows = []
    for ky in range(3):
        for kx in range(3):
            dy, dx = ky - 1, kx - 1
            m = jnp.ones((HW,), dtype=bool)
            if dy < 0:
                m = m & (hh >= -dy)
            if dy > 0:
                m = m & (hh < H - dy)
            if dx < 0:
                m = m & (ww >= -dx)
            if dx > 0:
                m = m & (ww < W - dx)
            rows.append(m.astype(jnp.float32))
    mk = jnp.stack(rows)[:, None, :]                 # (9, 1, HW)
    return jnp.tile(mk, (1, 1, batch_block))         # (9, 1, B*HW)


def bottleneck_forward(x_nchw, kparams, batch_block=None):
    """x_nchw: (N, Cin, H, W) f32 -> (N, G + Cin, H, W) f32 (inference mode).

    batch_block = images processed per grid step (stacked on the lane axis).
    Default: whole batch (best on single-TC v5e/v6e).  On v7x pass N//2 so both
    TensorCores get a grid step via dimension_semantics=("parallel",).
    """
    s1, b1, w1m, b2, w2m, p_eye = kparams
    N, Cin, H, W = x_nchw.shape
    C4 = w1m.shape[0]
    OUTC = w2m.shape[1]            # G + Cin
    G = OUTC - Cin
    HW = H * W

    if batch_block is None:
        batch_block = N
    assert N % batch_block == 0
    nb = N // batch_block
    lanes = batch_block * HW

    # channel-major, batch-on-lanes layout: xk[c, b*HW + p] = x[b, c, p]
    # (one transpose at the block boundary, amortizable over the dense block's layers)
    xk = x_nchw.reshape(N, Cin, HW).transpose(1, 0, 2).reshape(Cin, N * HW)
    masks = _border_masks(H, W, batch_block)

    out = pl.pallas_call(
        _make_bottleneck_kernel(H, W),
        out_shape=jax.ShapeDtypeStruct((OUTC, N * HW), jnp.float32),
        grid_spec=pltpu.PrefetchScalarGridSpec(
            num_scalar_prefetch=0,
            grid=(nb,),
            in_specs=[
                pl.BlockSpec((Cin, lanes), lambda n: (0, n)),
                pl.BlockSpec((Cin, 1), lambda n: (0, 0)),
                pl.BlockSpec((Cin, 1), lambda n: (0, 0)),
                pl.BlockSpec((C4, Cin), lambda n: (0, 0)),
                pl.BlockSpec((C4, 1), lambda n: (0, 0)),
                pl.BlockSpec((9, OUTC, C4), lambda n: (0, 0, 0)),
                pl.BlockSpec((OUTC, Cin), lambda n: (0, 0)),
                pl.BlockSpec((9, 1, lanes), lambda n: (0, 0, 0)),
            ],
            out_specs=pl.BlockSpec((OUTC, lanes), lambda n: (0, n)),
        ),
        compiler_params=pltpu.CompilerParams(
            dimension_semantics=("parallel",)),
    )(xk, s1, b1, w1m, b2, w2m, p_eye, masks)

    # back to NCHW
    return out.reshape(OUTC, N, HW).transpose(1, 0, 2).reshape(N, OUTC, H, W)


def init_raw_params(key, in_channel, growth_rate):
    """Deterministic synthetic PyTorch-style parameters (no checkpoint load)."""
    c4 = 4 * growth_rate
    ks = jax.random.split(key, 10)
    raw = dict(
        g1=1.0 + 0.1 * jax.random.normal(ks[0], (in_channel,), jnp.float32),
        be1=0.1 * jax.random.normal(ks[1], (in_channel,), jnp.float32),
        m1=0.1 * jax.random.normal(ks[2], (in_channel,), jnp.float32),
        v1=1.0 + 0.1 * jax.random.uniform(ks[3], (in_channel,), jnp.float32),
        w1=0.1 * jax.random.normal(ks[4], (c4, in_channel, 1, 1), jnp.float32),
        g2=1.0 + 0.1 * jax.random.normal(ks[5], (c4,), jnp.float32),
        be2=0.1 * jax.random.normal(ks[6], (c4,), jnp.float32),
        m2=0.1 * jax.random.normal(ks[7], (c4,), jnp.float32),
        v2=1.0 + 0.1 * jax.random.uniform(ks[8], (c4,), jnp.float32),
        w2=0.1 * jax.random.normal(ks[9], (growth_rate, c4, 3, 3), jnp.float32),
    )
    return raw


def fold_params(raw, eps=1e-5):
    """One-time constant fold: BN -> scale/bias, BN2 scale into conv1, tap-major w2."""
    s1 = raw["g1"] / jnp.sqrt(raw["v1"] + eps)
    b1 = raw["be1"] - raw["m1"] * s1
    s2 = raw["g2"] / jnp.sqrt(raw["v2"] + eps)
    b2 = raw["be2"] - raw["m2"] * s2

    g, c4 = raw["w2"].shape[0], raw["w2"].shape[1]
    cin = raw["w1"].shape[1]

    # conv1 OIHW (C4, Cin, 1, 1) -> (C4, Cin), BN2 scale folded per output row
    w1m = raw["w1"][:, :, 0, 0] * s2[:, None]

    # conv2 OIHW (G, C4, 3, 3) -> tap-major (9, G, C4) with tap index = ky*3 + kx,
    # then zero-padded to (9, G+Cin, C4) so the tap dots directly produce the full
    # concat-output rows.
    w2_taps = jnp.transpose(raw["w2"], (2, 3, 0, 1)).reshape(9, g, c4)
    w2m = jnp.concatenate(
        [w2_taps, jnp.zeros((9, cin, c4), jnp.float32)], axis=1)     # (9, G+Cin, C4)

    # pass-through embedding: identity into the bottom Cin output rows
    p_eye = jnp.concatenate(
        [jnp.zeros((g, cin), jnp.float32), jnp.eye(cin, dtype=jnp.float32)], axis=0)

    return (s1[:, None], b1[:, None], w1m, b2[:, None], w2m, p_eye)


def reference_forward(x_nchw, raw, eps=1e-5):
    """Pure-JAX reference of the same (inference-mode) forward, NCHW."""
    s1 = raw["g1"] / jnp.sqrt(raw["v1"] + eps)
    b1 = raw["be1"] - raw["m1"] * s1
    s2 = raw["g2"] / jnp.sqrt(raw["v2"] + eps)
    b2 = raw["be2"] - raw["m2"] * s2

    h = jnp.maximum(x_nchw * s1[None, :, None, None] + b1[None, :, None, None], 0.0)
    c1 = lax.conv_general_dilated(h, raw["w1"], (1, 1), 'VALID',
                                  dimension_numbers=('NCHW', 'OIHW', 'NCHW'))
    h2 = jnp.maximum(c1 * s2[None, :, None, None] + b2[None, :, None, None], 0.0)
    c2 = lax.conv_general_dilated(h2, raw["w2"], (1, 1), ((1, 1), (1, 1)),
                                  dimension_numbers=('NCHW', 'OIHW', 'NCHW'))
    return jnp.concatenate([c2, x_nchw], axis=1)


if __name__ == "__main__":
    key = jax.random.PRNGKey(0)
    k_x, k_p = jax.random.split(key)

    N, Cin, H, W = 2, 4, 16, 16
    growth_rate = 4

    x = jax.random.normal(k_x, (N, Cin, H, W), jnp.float32)
    raw = init_raw_params(k_p, Cin, growth_rate)
    kparams = fold_params(raw)

    # whole batch in one grid step (v5e/v6e); on v7x use batch_block=N//2
    out = jax.block_until_ready(bottleneck_forward(x, kparams))
    ref = jax.block_until_ready(reference_forward(x, raw))

    assert out.shape == (N, growth_rate + Cin, H, W), out.shape
    assert jnp.allclose(out, ref, atol=1e-4, rtol=1e-4), float(
        jnp.max(jnp.abs(out - ref)))

    print("KERNEL_OK")
</pallas_src>

<mosaic_0001>
module attributes {stable_mosaic.version = 11 : i64} {
  func.func @kernel(%arg0: i32, %arg1: memref<4x512xf32, #tpu.memory_space<vmem>>, %arg2: memref<4x1xf32, #tpu.memory_space<vmem>>, %arg3: memref<4x1xf32, #tpu.memory_space<vmem>>, %arg4: memref<16x4xf32, #tpu.memory_space<vmem>>, %arg5: memref<16x1xf32, #tpu.memory_space<vmem>>, %arg6: memref<9x8x16xf32, #tpu.memory_space<vmem>>, %arg7: memref<8x4xf32, #tpu.memory_space<vmem>>, %arg8: memref<9x1x512xf32, #tpu.memory_space<vmem>>, %arg9: memref<8x512xf32, #tpu.memory_space<vmem>>) attributes {dimension_semantics = [#tpu.dimension_semantics<parallel>], iteration_bounds = array<i64: 1>, scalar_prefetch = 0 : i64, scratch_operands = 0 : i64, tpu.core_type = #tpu.core_type<tc>, window_params = [{transform_indices = @transform_0, window_bounds = array<i64: 4, 512>}, {pipeline_mode = #tpu.pipeline_mode<synchronous>, transform_indices = @transform_1, window_bounds = array<i64: 4, 1>}, {pipeline_mode = #tpu.pipeline_mode<synchronous>, transform_indices = @transform_2, window_bounds = array<i64: 4, 1>}, {pipeline_mode = #tpu.pipeline_mode<synchronous>, transform_indices = @transform_3, window_bounds = array<i64: 16, 4>}, {pipeline_mode = #tpu.pipeline_mode<synchronous>, transform_indices = @transform_4, window_bounds = array<i64: 16, 1>}, {pipeline_mode = #tpu.pipeline_mode<synchronous>, transform_indices = @transform_5, window_bounds = array<i64: 9, 8, 16>}, {pipeline_mode = #tpu.pipeline_mode<synchronous>, transform_indices = @transform_6, window_bounds = array<i64: 8, 4>}, {pipeline_mode = #tpu.pipeline_mode<synchronous>, transform_indices = @transform_7, window_bounds = array<i64: 9, 1, 512>}, {transform_indices = @transform_8, window_bounds = array<i64: 8, 512>}]} {
    %c0 = arith.constant 0 : index
    %c0_0 = arith.constant 0 : index
    %0 = vector.load %arg1[%c0, %c0_0] : memref<4x512xf32, #tpu.memory_space<vmem>>, vector<4x512xf32>
    %c0_1 = arith.constant 0 : index
    %c0_2 = arith.constant 0 : index
    %1 = vector.load %arg2[%c0_1, %c0_2] : memref<4x1xf32, #tpu.memory_space<vmem>>, vector<4x1xf32>
    %2 = vector.broadcast %1 : vector<4x1xf32> to vector<4x512xf32>
    %3 = arith.mulf %0, %2 : vector<4x512xf32>
    %c0_3 = arith.constant 0 : index
    %c0_4 = arith.constant 0 : index
    %4 = vector.load %arg3[%c0_3, %c0_4] : memref<4x1xf32, #tpu.memory_space<vmem>>, vector<4x1xf32>
    %5 = vector.broadcast %4 : vector<4x1xf32> to vector<4x512xf32>
    %6 = arith.addf %3, %5 : vector<4x512xf32>
    %cst = arith.constant 0.000000e+00 : f32
    %7 = vector.broadcast %cst : f32 to vector<4x512xf32>
    %8 = arith.maximumf %6, %7 : vector<4x512xf32>
    %c0_5 = arith.constant 0 : index
    %c0_6 = arith.constant 0 : index
    %9 = vector.load %arg4[%c0_5, %c0_6] : memref<16x4xf32, #tpu.memory_space<vmem>>, vector<16x4xf32>
    %cst_7 = arith.constant dense<0.000000e+00> : vector<16x512xf32>
    %10 = tpu.matmul %9, %8, %cst_7 {dimension_numbers = #tpu.dot_dimension_numbers<[1], [0], [0], [1], [0, 0, 1, 1], [], []>} : vector<16x4xf32>, vector<4x512xf32>, vector<16x512xf32> -> vector<16x512xf32>
    %c0_8 = arith.constant 0 : index
    %c0_9 = arith.constant 0 : index
    %11 = vector.load %arg5[%c0_8, %c0_9] : memref<16x1xf32, #tpu.memory_space<vmem>>, vector<16x1xf32>
    %12 = vector.broadcast %11 : vector<16x1xf32> to vector<16x512xf32>
    %13 = arith.addf %10, %12 : vector<16x512xf32>
    %cst_10 = arith.constant 0.000000e+00 : f32
    %14 = vector.broadcast %cst_10 : f32 to vector<16x512xf32>
    %15 = arith.maximumf %13, %14 : vector<16x512xf32>
    %c0_11 = arith.constant 0 : index
    %c0_12 = arith.constant 0 : index
    %16 = vector.load %arg7[%c0_11, %c0_12] : memref<8x4xf32, #tpu.memory_space<vmem>>, vector<8x4xf32>
    %cst_13 = arith.constant dense<0.000000e+00> : vector<8x512xf32>
    %17 = tpu.matmul %16, %0, %cst_13 {dimension_numbers = #tpu.dot_dimension_numbers<[1], [0], [0], [1], [0, 0, 1, 1], [], []>} : vector<8x4xf32>, vector<4x512xf32>, vector<8x512xf32> -> vector<8x512xf32>
    %c17_i32 = arith.constant 17 : i32
    %18 = tpu.dynamic_rotate %15 by %c17_i32 dim 1 : vector<16x512xf32>, i32 -> vector<16x512xf32>
    %c0_14 = arith.constant 0 : index
    %c0_15 = arith.constant 0 : index
    %c0_16 = arith.constant 0 : index
    %19 = vector.load %arg8[%c0_14, %c0_15, %c0_16] : memref<9x1x512xf32, #tpu.memory_space<vmem>>, vector<1x1x512xf32>
    %20 = vector.shape_cast %19 : vector<1x1x512xf32> to vector<1x512xf32>
    %21 = vector.broadcast %20 : vector<1x512xf32> to vector<16x512xf32>
    %22 = arith.mulf %18, %21 : vector<16x512xf32>
    %c0_17 = arith.constant 0 : index
    %c0_18 = arith.constant 0 : index
    %c0_19 = arith.constant 0 : index
    %23 = vector.load %arg6[%c0_17, %c0_18, %c0_19] : memref<9x8x16xf32, #tpu.memory_space<vmem>>, vector<1x8x16xf32>
    %24 = vector.shape_cast %23 : vector<1x8x16xf32> to vector<8x16xf32>
    %cst_20 = arith.constant dense<0.000000e+00> : vector<8x512xf32>
    %25 = tpu.matmul %24, %22, %cst_20 {dimension_numbers = #tpu.dot_dimension_numbers<[1], [0], [0], [1], [0, 0, 1, 1], [], []>} : vector<8x16xf32>, vector<16x512xf32>, vector<8x512xf32> -> vector<8x512xf32>
    %26 = arith.addf %17, %25 : vector<8x512xf32>
    %c16_i32 = arith.constant 16 : i32
    %27 = tpu.dynamic_rotate %15 by %c16_i32 dim 1 : vector<16x512xf32>, i32 -> vector<16x512xf32>
    %c1 = arith.constant 1 : index
    %c0_21 = arith.constant 0 : index
    %c0_22 = arith.constant 0 : index
    %28 = vector.load %arg8[%c1, %c0_21, %c0_22] : memref<9x1x512xf32, #tpu.memory_space<vmem>>, vector<1x1x512xf32>
    %29 = vector.shape_cast %28 : vector<1x1x512xf32> to vector<1x512xf32>
    %30 = vector.broadcast %29 : vector<1x512xf32> to vector<16x512xf32>
    %31 = arith.mulf %27, %30 : vector<16x512xf32>
    %c1_23 = arith.constant 1 : index
    %c0_24 = arith.constant 0 : index
    %c0_25 = arith.constant 0 : index
    %32 = vector.load %arg6[%c1_23, %c0_24, %c0_25] : memref<9x8x16xf32, #tpu.memory_space<vmem>>, vector<1x8x16xf32>
    %33 = vector.shape_cast %32 : vector<1x8x16xf32> to vector<8x16xf32>
    %cst_26 = arith.constant dense<0.000000e+00> : vector<8x512xf32>
    %34 = tpu.matmul %33, %31, %cst_26 {dimension_numbers = #tpu.dot_dimension_numbers<[1], [0], [0], [1], [0, 0, 1, 1], [], []>} : vector<8x16xf32>, vector<16x512xf32>, vector<8x512xf32> -> vector<8x512xf32>
    %35 = arith.addf %26, %34 : vector<8x512xf32>
    %c15_i32 = arith.constant 15 : i32
    %36 = tpu.dynamic_rotate %15 by %c15_i32 dim 1 : vector<16x512xf32>, i32 -> vector<16x512xf32>
    %c2 = arith.constant 2 : index
    %c0_27 = arith.constant 0 : index
    %c0_28 = arith.constant 0 : index
    %37 = vector.load %arg8[%c2, %c0_27, %c0_28] : memref<9x1x512xf32, #tpu.memory_space<vmem>>, vector<1x1x512xf32>
    %38 = vector.shape_cast %37 : vector<1x1x512xf32> to vector<1x512xf32>
    %39 = vector.broadcast %38 : vector<1x512xf32> to vector<16x512xf32>
    %40 = arith.mulf %36, %39 : vector<16x512xf32>
    %c2_29 = arith.constant 2 : index
    %c0_30 = arith.constant 0 : index
    %c0_31 = arith.constant 0 : index
    %41 = vector.load %arg6[%c2_29, %c0_30, %c0_31] : memref<9x8x16xf32, #tpu.memory_space<vmem>>, vector<1x8x16xf32>
    %42 = vector.shape_cast %41 : vector<1x8x16xf32> to vector<8x16xf32>
    %cst_32 = arith.constant dense<0.000000e+00> : vector<8x512xf32>
    %43 = tpu.matmul %42, %40, %cst_32 {dimension_numbers = #tpu.dot_dimension_numbers<[1], [0], [0], [1], [0, 0, 1, 1], [], []>} : vector<8x16xf32>, vector<16x512xf32>, vector<8x512xf32> -> vector<8x512xf32>
    %44 = arith.addf %35, %43 : vector<8x512xf32>
    %c1_i32 = arith.constant 1 : i32
    %45 = tpu.dynamic_rotate %15 by %c1_i32 dim 1 : vector<16x512xf32>, i32 -> vector<16x512xf32>
    %c3 = arith.constant 3 : index
    %c0_33 = arith.constant 0 : index
    %c0_34 = arith.constant 0 : index
    %46 = vector.load %arg8[%c3, %c0_33, %c0_34] : memref<9x1x512xf32, #tpu.memory_space<vmem>>, vector<1x1x512xf32>
    %47 = vector.shape_cast %46 : vector<1x1x512xf32> to vector<1x512xf32>
    %48 = vector.broadcast %47 : vector<1x512xf32> to vector<16x512xf32>
    %49 = arith.mulf %45, %48 : vector<16x512xf32>
    %c3_35 = arith.constant 3 : index
    %c0_36 = arith.constant 0 : index
    %c0_37 = arith.constant 0 : index
    %50 = vector.load %arg6[%c3_35, %c0_36, %c0_37] : memref<9x8x16xf32, #tpu.memory_space<vmem>>, vector<1x8x16xf32>
    %51 = vector.shape_cast %50 : vector<1x8x16xf32> to vector<8x16xf32>
    %cst_38 = arith.constant dense<0.000000e+00> : vector<8x512xf32>
    %52 = tpu.matmul %51, %49, %cst_38 {dimension_numbers = #tpu.dot_dimension_numbers<[1], [0], [0], [1], [0, 0, 1, 1], [], []>} : vector<8x16xf32>, vector<16x512xf32>, vector<8x512xf32> -> vector<8x512xf32>
    %53 = arith.addf %44, %52 : vector<8x512xf32>
    %c4 = arith.constant 4 : index
    %c0_39 = arith.constant 0 : index
    %c0_40 = arith.constant 0 : index
    %54 = vector.load %arg6[%c4, %c0_39, %c0_40] : memref<9x8x16xf32, #tpu.memory_space<vmem>>, vector<1x8x16xf32>
    %55 = vector.shape_cast %54 : vector<1x8x16xf32> to vector<8x16xf32>
    %cst_41 = arith.constant dense<0.000000e+00> : vector<8x512xf32>
    %56 = tpu.matmul %55, %15, %cst_41 {dimension_numbers = #tpu.dot_dimension_numbers<[1], [0], [0], [1], [0, 0, 1, 1], [], []>} : vector<8x16xf32>, vector<16x512xf32>, vector<8x512xf32> -> vector<8x512xf32>
    %57 = arith.addf %53, %56 : vector<8x512xf32>
    %c511_i32 = arith.constant 511 : i32
    %58 = tpu.dynamic_rotate %15 by %c511_i32 dim 1 : vector<16x512xf32>, i32 -> vector<16x512xf32>
    %c5 = arith.constant 5 : index
    %c0_42 = arith.constant 0 : index
    %c0_43 = arith.constant 0 : index
    %59 = vector.load %arg8[%c5, %c0_42, %c0_43] : memref<9x1x512xf32, #tpu.memory_space<vmem>>, vector<1x1x512xf32>
    %60 = vector.shape_cast %59 : vector<1x1x512xf32> to vector<1x512xf32>
    %61 = vector.broadcast %60 : vector<1x512xf32> to vector<16x512xf32>
    %62 = arith.mulf %58, %61 : vector<16x512xf32>
    %c5_44 = arith.constant 5 : index
    %c0_45 = arith.constant 0 : index
    %c0_46 = arith.constant 0 : index
    %63 = vector.load %arg6[%c5_44, %c0_45, %c0_46] : memref<9x8x16xf32, #tpu.memory_space<vmem>>, vector<1x8x16xf32>
    %64 = vector.shape_cast %63 : vector<1x8x16xf32> to vector<8x16xf32>
    %cst_47 = arith.constant dense<0.000000e+00> : vector<8x512xf32>
    %65 = tpu.matmul %64, %62, %cst_47 {dimension_numbers = #tpu.dot_dimension_numbers<[1], [0], [0], [1], [0, 0, 1, 1], [], []>} : vector<8x16xf32>, vector<16x512xf32>, vector<8x512xf32> -> vector<8x512xf32>
    %66 = arith.addf %57, %65 : vector<8x512xf32>
    %c497_i32 = arith.constant 497 : i32
    %67 = tpu.dynamic_rotate %15 by %c497_i32 dim 1 : vector<16x512xf32>, i32 -> vector<16x512xf32>
    %c6 = arith.constant 6 : index
    %c0_48 = arith.constant 0 : index
    %c0_49 = arith.constant 0 : index
    %68 = vector.load %arg8[%c6, %c0_48, %c0_49] : memref<9x1x512xf32, #tpu.memory_space<vmem>>, vector<1x1x512xf32>
    %69 = vector.shape_cast %68 : vector<1x1x512xf32> to vector<1x512xf32>
    %70 = vector.broadcast %69 : vector<1x512xf32> to vector<16x512xf32>
    %71 = arith.mulf %67, %70 : vector<16x512xf32>
    %c6_50 = arith.constant 6 : index
    %c0_51 = arith.constant 0 : index
    %c0_52 = arith.constant 0 : index
    %72 = vector.load %arg6[%c6_50, %c0_51, %c0_52] : memref<9x8x16xf32, #tpu.memory_space<vmem>>, vector<1x8x16xf32>
    %73 = vector.shape_cast %72 : vector<1x8x16xf32> to vector<8x16xf32>
    %cst_53 = arith.constant dense<0.000000e+00> : vector<8x512xf32>
    %74 = tpu.matmul %73, %71, %cst_53 {dimension_numbers = #tpu.dot_dimension_numbers<[1], [0], [0], [1], [0, 0, 1, 1], [], []>} : vector<8x16xf32>, vector<16x512xf32>, vector<8x512xf32> -> vector<8x512xf32>
    %75 = arith.addf %66, %74 : vector<8x512xf32>
    %c496_i32 = arith.constant 496 : i32
    %76 = tpu.dynamic_rotate %15 by %c496_i32 dim 1 : vector<16x512xf32>, i32 -> vector<16x512xf32>
    %c7 = arith.constant 7 : index
    %c0_54 = arith.constant 0 : index
    %c0_55 = arith.constant 0 : index
    %77 = vector.load %arg8[%c7, %c0_54, %c0_55] : memref<9x1x512xf32, #tpu.memory_space<vmem>>, vector<1x1x512xf32>
    %78 = vector.shape_cast %77 : vector<1x1x512xf32> to vector<1x512xf32>
    %79 = vector.broadcast %78 : vector<1x512xf32> to vector<16x512xf32>
    %80 = arith.mulf %76, %79 : vector<16x512xf32>
    %c7_56 = arith.constant 7 : index
    %c0_57 = arith.constant 0 : index
    %c0_58 = arith.constant 0 : index
    %81 = vector.load %arg6[%c7_56, %c0_57, %c0_58] : memref<9x8x16xf32, #tpu.memory_space<vmem>>, vector<1x8x16xf32>
    %82 = vector.shape_cast %81 : vector<1x8x16xf32> to vector<8x16xf32>
    %cst_59 = arith.constant dense<0.000000e+00> : vector<8x512xf32>
    %83 = tpu.matmul %82, %80, %cst_59 {dimension_numbers = #tpu.dot_dimension_numbers<[1], [0], [0], [1], [0, 0, 1, 1], [], []>} : vector<8x16xf32>, vector<16x512xf32>, vector<8x512xf32> -> vector<8x512xf32>
    %84 = arith.addf %75, %83 : vector<8x512xf32>
    %c495_i32 = arith.constant 495 : i32
    %85 = tpu.dynamic_rotate %15 by %c495_i32 dim 1 : vector<16x512xf32>, i32 -> vector<16x512xf32>
    %c8 = arith.constant 8 : index
    %c0_60 = arith.constant 0 : index
    %c0_61 = arith.constant 0 : index
    %86 = vector.load %arg8[%c8, %c0_60, %c0_61] : memref<9x1x512xf32, #tpu.memory_space<vmem>>, vector<1x1x512xf32>
    %87 = vector.shape_cast %86 : vector<1x1x512xf32> to vector<1x512xf32>
    %88 = vector.broadcast %87 : vector<1x512xf32> to vector<16x512xf32>
    %89 = arith.mulf %85, %88 : vector<16x512xf32>
    %c8_62 = arith.constant 8 : index
    %c0_63 = arith.constant 0 : index
    %c0_64 = arith.constant 0 : index
    %90 = vector.load %arg6[%c8_62, %c0_63, %c0_64] : memref<9x8x16xf32, #tpu.memory_space<vmem>>, vector<1x8x16xf32>
    %91 = vector.shape_cast %90 : vector<1x8x16xf32> to vector<8x16xf32>
    %cst_65 = arith.constant dense<0.000000e+00> : vector<8x512xf32>
    %92 = tpu.matmul %91, %89, %cst_65 {dimension_numbers = #tpu.dot_dimension_numbers<[1], [0], [0], [1], [0, 0, 1, 1], [], []>} : vector<8x16xf32>, vector<16x512xf32>, vector<8x512xf32> -> vector<8x512xf32>
    %93 = arith.addf %84, %92 : vector<8x512xf32>
    %c0_66 = arith.constant 0 : index
    %c0_67 = arith.constant 0 : index
    %94 = vector.load %arg9[%c0_66, %c0_67] : memref<8x512xf32, #tpu.memory_space<vmem>>, vector<8x512xf32>
    tpu.vector_store %arg9[%c0_66, %c0_67], %93 {strides = array<i32>} : memref<8x512xf32, #tpu.memory_space<vmem>>, vector<8x512xf32>,
    return
  }
  func.func @transform_0(%arg0: i32) -> (i32, i32) {
    %c0_i32 = arith.constant 0 : i32
    %c0_i32_0 = arith.constant 0 : i32
    return %c0_i32, %arg0 : i32, i32
  }
  func.func @transform_1(%arg0: i32) -> (i32, i32) {
    %c0_i32 = arith.constant 0 : i32
    %c0_i32_0 = arith.constant 0 : i32
    %c0_i32_1 = arith.constant 0 : i32
    return %c0_i32, %c0_i32_0 : i32, i32
  }
  func.func @transform_2(%arg0: i32) -> (i32, i32) {
    %c0_i32 = arith.constant 0 : i32
    %c0_i32_0 = arith.constant 0 : i32
    %c0_i32_1 = arith.constant 0 : i32
    return %c0_i32, %c0_i32_0 : i32, i32
  }
  func.func @transform_3(%arg0: i32) -> (i32, i32) {
    %c0_i32 = arith.constant 0 : i32
    %c0_i32_0 = arith.constant 0 : i32
    %c0_i32_1 = arith.constant 0 : i32
    return %c0_i32, %c0_i32_0 : i32, i32
  }
  func.func @transform_4(%arg0: i32) -> (i32, i32) {
    %c0_i32 = arith.constant 0 : i32
    %c0_i32_0 = arith.constant 0 : i32
    %c0_i32_1 = arith.constant 0 : i32
    return %c0_i32, %c0_i32_0 : i32, i32
  }
  func.func @transform_5(%arg0: i32) -> (i32, i32, i32) {
    %c0_i32 = arith.constant 0 : i32
    %c0_i32_0 = arith.constant 0 : i32
    %c0_i32_1 = arith.constant 0 : i32
    %c0_i32_2 = arith.constant 0 : i32
    return %c0_i32, %c0_i32_0, %c0_i32_1 : i32, i32, i32
  }
  func.func @transform_6(%arg0: i32) -> (i32, i32) {
    %c0_i32 = arith.constant 0 : i32
    %c0_i32_0 = arith.constant 0 : i32
    %c0_i32_1 = arith.constant 0 : i32
    return %c0_i32, %c0_i32_0 : i32, i32
  }
  func.func @transform_7(%arg0: i32) -> (i32, i32, i32) {
    %c0_i32 = arith.constant 0 : i32
    %c0_i32_0 = arith.constant 0 : i32
    %c0_i32_1 = arith.constant 0 : i32
    %c0_i32_2 = arith.constant 0 : i32
    return %c0_i32, %c0_i32_0, %c0_i32_1 : i32, i32, i32
  }
  func.func @transform_8(%arg0: i32) -> (i32, i32) {
    %c0_i32 = arith.constant 0 : i32
    %c0_i32_0 = arith.constant 0 : i32
    return %c0_i32, %arg0 : i32, i32
  }
}

</mosaic_0001>

<llo_original>
// kernel: tpu_custom_call.1
$region0: #{tpu_custom_call.1}
  #allocation0 [shape = 'u32[]', space=smem, size = 0x4, offset = 0x4, fixed_abs, tag = 'smem constant byte address 0x4 - core index']
  #allocation1 [shape = 'u32[144,128]{1,0:T(1,128)}', space=vmem, size = 0x12000, scoped, tag = 'internal scratch']
  %s0 = inlined_call_operand.vmem [shape: f32[4,512], index: 0, kind: input, shape index: {}]
  %s1 = inlined_call_operand.vmem [shape: f32[4,1], index: 1, kind: input, shape index: {}]
  %s2 = inlined_call_operand.vmem [shape: f32[4,1], index: 2, kind: input, shape index: {}]
  %s3 = inlined_call_operand.vmem [shape: f32[16,4], index: 3, kind: input, shape index: {}]
  %s4 = inlined_call_operand.vmem [shape: f32[16,1], index: 4, kind: input, shape index: {}]
  %s5 = inlined_call_operand.hbm [shape: f32[9,8,16], index: 5, kind: input, shape index: {}]
  %s6 = inlined_call_operand.vmem [shape: f32[8,4], index: 6, kind: input, shape index: {}]
  %s7 = inlined_call_operand.vmem [shape: f32[9,1,512], index: 7, kind: input, shape index: {}]
  %s8 = inlined_call_operand.hbm [shape: f32[8,512], index: 8, kind: output, shape index: {}]
  %s9 = sld [smem:[#allocation0]]
  $region46: #{tpu_custom_call.1} parent=0
    _
  %s11 = ssub.s32 1, %s9
  %s12 = scalar_select 0, %s11, %s9
  $region1: #{tpu_custom_call.1} parent=0
    #allocation2 [shape = 'u8[36864]{0}', space=vmem, size = 0x9000, scoped, tag = 'input window, operand 5, single buffered']
    #allocation3 [shape = 's32[1]{0}', space=sflag, size = 0x4, scoped, tag = 'scoped memory for tpu_custom_call.1']
    #allocation4 [shape = 's32[1]{0}', space=sflag, size = 0x4, scoped, tag = 'scoped memory for tpu_custom_call.1']
    #allocation5 [shape = 'u8[16384]{0}', space=vmem, size = 0x4000, scoped, tag = 'output window, operand 0, single buffered']
    %13 = vsyncpa [#allocation3], 0
    %14 = vsyncpa [#allocation4], 0
    // Predicated region
    $region2: #{tpu_custom_call.1} parent=1 // pred_check
      _
    $region3: #{tpu_custom_call.1} parent=1 // pred_check_branch
      %16 = sbr.rel (0) target = $region5
    $region4: #{tpu_custom_call.1} parent=1 // pred_region
      _
    $region5: #{tpu_custom_call.1} parent=1 // pred_fallthru
      _
    // Predicated region
    $region6: #{tpu_custom_call.1} parent=1 // pred_check
      _
    $region7: #{tpu_custom_call.1} parent=1 // pred_check_branch
      %18 = sbr.rel (0) target = $region9
    $region8: #{tpu_custom_call.1} parent=1 // pred_region
      _
    $region9: #{tpu_custom_call.1} parent=1 // pred_fallthru
      _
    // Predicated region
    $region10: #{tpu_custom_call.1} parent=1 // pred_check
      _
    $region11: #{tpu_custom_call.1} parent=1 // pred_check_branch
      %20 = sbr.rel (0) target = $region13
    $region12: #{tpu_custom_call.1} parent=1 // pred_region
      _
    $region13: #{tpu_custom_call.1} parent=1 // pred_fallthru
      _
    // Predicated region
    $region14: #{tpu_custom_call.1} parent=1 // pred_check
      _
    $region15: #{tpu_custom_call.1} parent=1 // pred_check_branch
      %22 = sbr.rel (0) target = $region17
    $region16: #{tpu_custom_call.1} parent=1 // pred_region
      _
    $region17: #{tpu_custom_call.1} parent=1 // pred_fallthru
      _
    // Predicated region
    $region18: #{tpu_custom_call.1} parent=1 // pred_check
      _
    $region19: #{tpu_custom_call.1} parent=1 // pred_check_branch
      %24 = sbr.rel (0) target = $region21
    $region20: #{tpu_custom_call.1} parent=1 // pred_region
      _
    $region21: #{tpu_custom_call.1} parent=1 // pred_fallthru
      _
    // Predicated region
    $region22: #{tpu_custom_call.1} parent=1 // pred_check
      _
    $region23: #{tpu_custom_call.1} parent=1 // pred_check_branch
      %26 = sbr.rel (0) target = $region25
    $region24: #{tpu_custom_call.1} parent=1 // pred_region
      %s28 = ssub.s32 1152, 1152
      %29 = vsyncadd [#allocation3], %s28
      %s30 = sshll.u32 [#allocation2], 4
      %s31 = int_to_ptr.vmem [resolvable:$true] %s30
      %36 = dma.hbm_to_vmem [thread:$0]  %s5, 1152, %s31, [#allocation3], 128, 128, 8
    $region25: #{tpu_custom_call.1} parent=1 // pred_fallthru
      _
    // Predicated region
    $region26: #{tpu_custom_call.1} parent=1 // pred_check
      _
    $region27: #{tpu_custom_call.1} parent=1 // pred_check_branch
      %38 = sbr.rel (0) target = $region29
    $region28: #{tpu_custom_call.1} parent=1 // pred_region
      _
    $region29: #{tpu_custom_call.1} parent=1 // pred_fallthru
      _
    // Predicated region
    $region30: #{tpu_custom_call.1} parent=1 // pred_check
      _
    $region31: #{tpu_custom_call.1} parent=1 // pred_check_branch
      %40 = sbr.rel (0) target = $region33
    $region32: #{tpu_custom_call.1} parent=1 // pred_region
      _
    $region33: #{tpu_custom_call.1} parent=1 // pred_fallthru
      _
    // Predicated region
    $region34: #{tpu_custom_call.1} parent=1 // pred_check
      _
    $region35: #{tpu_custom_call.1} parent=1 // pred_check_branch
      %42 = sbr.rel (0) target = $region37
    $region36: #{tpu_custom_call.1} parent=1 // pred_region
      %43 = dma.done [#allocation3], 1152
    $region37: #{tpu_custom_call.1} parent=1 // pred_fallthru
      _
    %v44 = vld [vmem:[%s0] sm:$0xff]
    %v45 = vld [vmem:[%s0 + $0x8] sm:$0xff]
    %v46 = vld [vmem:[%s1] sm:$0xf]
    %48 = vset.pattern.permute.xlu0 0
    %49 = vperm.xlu0 %48, %v46
    %v50 = vpop.permute.xlu0 %49
    %v52 = vunpack.c.l.s4 839922192
    %v53 = vunpack.c.0.s8 %v52
    %v54 = vlaneseq
    %v55 = vshrl.u32 %v54, 7
    %v56 = vsub.s32 %v53, %v55
    %v57 = vrot.slane %v50, %v56
    %v59 = vmul.f32 %v44, %v57
    %v60 = vmul.f32 %v45, %v57
    %v61 = vld [vmem:[%s2] sm:$0xf]
    %63 = vset.pattern.permute.xlu0 0
    %64 = vperm.xlu0 %63, %v61
    %v65 = vpop.permute.xlu0 %64
    %v67 = vunpack.c.l.s4 839922192
    %v68 = vunpack.c.0.s8 %v67
    %v69 = vlaneseq
    %v70 = vshrl.u32 %v69, 7
    %v71 = vsub.s32 %v68, %v70
    %v72 = vrot.slane %v65, %v71
    %v74 = vadd.f32 %v59, %v72
    %v75 = vadd.f32 %v60, %v72
    %v76 = vmax.f32 %v74, 0.0
    %v77 = vmax.f32 %v75, 0.0
    %v78 = vld [vmem:[%s3] sm:$0xff]
    %v79 = vld [vmem:[%s3 + $0x8] sm:$0xff]
    %v80 = vld [vmem:[%s4] sm:$0xff]
    %v81 = vld [vmem:[%s4 + $0x8] sm:$0xff]
    %83 = vset.pattern.permute.xlu0 0
    %84 = vperm.xlu0 %83, %v80
    %v85 = vpop.permute.xlu0 %84
    %88 = vset.pattern.permute.xlu0 0
    %89 = vperm.xlu0 %88, %v81
    %v90 = vpop.permute.xlu0 %89
    %v94 = vcombine.high %v76, %v76
    %v95 = vcombine.high %v77, %v77
    %vm96 = vcmask 31744
    %v98 = vsel %vm96, %v78, 0
    %v101 = vsel %vm96, %v79, 0
    %vm103 = vcmask 1043456
    %v104 = vsel %vm103, %v76, 0
    %v106 = vsel %vm103, %v94, 0
    %v108 = vsel %vm103, %v77, 0
    %v110 = vsel %vm103, %v95, 0
    %112 = vmatprep.subr.mxu0 0.0
    %113 = vmatpush1.msra.mxu0 0.0
    %114 = vmatprep.subr.mxu0 0.0
    %115 = vmatpush1.msra.mxu0 0.0
    %116 = vmatprep.subr.mxu0 0.0
    %117 = vmatpush1.msra.mxu0 0.0
    %118 = vmatprep.subr.mxu0 0.0
    %119 = vmatpush1.msra.mxu0 0.0
    %120 = vmatprep.subr.mxu0 0.0
    %121 = vmatpush1.msra.mxu0 0.0
    %122 = vmatprep.subr.mxu0 0.0
    %123 = vmatpush1.msra.mxu0 0.0
    %124 = vmatprep.subr.mxu0 0.0
    %125 = vmatpush1.msra.mxu0 0.0
    %126 = vmatprep.subr.mxu0 0.0
    %127 = vmatpush1.msra.mxu0 0.0
    %128 = vmatprep.subr.mxu0 0.0
    %129 = vmatpush1.msra.mxu0 0.0
    %130 = vmatprep.subr.mxu0 0.0
    %131 = vmatpush1.msra.mxu0 0.0
    %132 = vmatprep.subr.mxu0 0.0
    %133 = vmatpush1.msra.mxu0 0.0
    %134 = vmatprep.subr.mxu0 0.0
    %135 = vmatpush1.msra.mxu0 0.0
    %136 = vmatprep.subr.mxu0 0.0
    %137 = vmatpush1.msra.mxu0 0.0
    %138 = vmatprep.subr.mxu0 0.0
    %139 = vmatpush1.msra.mxu0 0.0
    %140 = vmatprep.subr.mxu0 0.0
    %141 = vmatpush1.msra.mxu0 0.0
    %142 = vmatprep.subr.mxu0 %v106
    %143 = vmatpush1.msra.mxu0 %v104
    %144 = vmatprep.subr.mxu0 0.0
    %145 = vmatpush2.msra.mxu0 0.0
    %146 = vmatprep.subr.mxu0 0.0
    %147 = vmatpush2.msra.mxu0 0.0
    %148 = vmatprep.subr.mxu0 0.0
    %149 = vmatpush2.msra.mxu0 0.0
    %150 = vmatprep.subr.mxu0 0.0
    %151 = vmatpush2.msra.mxu0 0.0
    %152 = vmatprep.subr.mxu0 0.0
    %153 = vmatpush2.msra.mxu0 0.0
    %154 = vmatprep.subr.mxu0 0.0
    %155 = vmatpush2.msra.mxu0 0.0
    %156 = vmatprep.subr.mxu0 0.0
    %157 = vmatpush2.msra.mxu0 0.0
    %158 = vmatprep.subr.mxu0 0.0
    %159 = vmatpush2.msra.mxu0 0.0
    %160 = vmatprep.subr.mxu0 0.0
    %161 = vmatpush2.msra.mxu0 0.0
    %162 = vmatprep.subr.mxu0 0.0
    %163 = vmatpush2.msra.mxu0 0.0
    %164 = vmatprep.subr.mxu0 0.0
    %165 = vmatpush2.msra.mxu0 0.0
    %166 = vmatprep.subr.mxu0 0.0
    %167 = vmatpush2.msra.mxu0 0.0
    %168 = vmatprep.subr.mxu0 0.0
    %169 = vmatpush2.msra.mxu0 0.0
    %170 = vmatprep.subr.mxu0 0.0
    %171 = vmatpush2.msra.mxu0 0.0
    %172 = vmatprep.subr.mxu0 0.0
    %173 = vmatpush2.msra.mxu0 0.0
    %174 = vmatprep.subr.mxu0 0.0
    %175 = vmatpush2.msra.mxu0 0.0
    %176 = vmatprep.mubr.f32.mxu0 0.0
    %177 = vmatmul.mubr.f32.gmra.mxu0 %v98
    %v178 = vpop.f32.mrf.mxu0
    %v179 = vadd.f32 %v85, %v178
    %v180 = vpop.f32.mrf.mxu0
    %v181 = vadd.f32 %v85, %v180
    %182 = vmatprep.mubr.f32.mxu0 0.0
    %183 = vmatmul.mubr.f32.gmra.mxu0 %v101
    %v184 = vpop.f32.mrf.mxu0
    %v185 = vadd.f32 %v90, %v184
    %v186 = vpop.f32.mrf.mxu0
    %v187 = vadd.f32 %v90, %v186
    %188 = vdwg.mxu0
    %189 = vmatprep.subr.mxu0 0.0
    %190 = vmatpush1.msra.mxu0 0.0
    %191 = vmatprep.subr.mxu0 0.0
    %192 = vmatpush1.msra.mxu0 0.0
    %193 = vmatprep.subr.mxu0 0.0
    %194 = vmatpush1.msra.mxu0 0.0
    %195 = vmatprep.subr.mxu0 0.0
    %196 = vmatpush1.msra.mxu0 0.0
    %197 = vmatprep.subr.mxu0 0.0
    %198 = vmatpush1.msra.mxu0 0.0
    %199 = vmatprep.subr.mxu0 0.0
    %200 = vmatpush1.msra.mxu0 0.0
    %201 = vmatprep.subr.mxu0 0.0
    %202 = vmatpush1.msra.mxu0 0.0
    %203 = vmatprep.subr.mxu0 0.0
    %204 = vmatpush1.msra.mxu0 0.0
    %205 = vmatprep.subr.mxu0 0.0
    %206 = vmatpush1.msra.mxu0 0.0
    %207 = vmatprep.subr.mxu0 0.0
    %208 = vmatpush1.msra.mxu0 0.0
    %209 = vmatprep.subr.mxu0 0.0
    %210 = vmatpush1.msra.mxu0 0.0
    %211 = vmatprep.subr.mxu0 0.0
    %212 = vmatpush1.msra.mxu0 0.0
    %213 = vmatprep.subr.mxu0 0.0
    %214 = vmatpush1.msra.mxu0 0.0
    %215 = vmatprep.subr.mxu0 0.0
    %216 = vmatpush1.msra.mxu0 0.0
    %217 = vmatprep.subr.mxu0 0.0
    %218 = vmatpush1.msra.mxu0 0.0
    %219 = vmatprep.subr.mxu0 %v110
    %220 = vmatpush1.msra.mxu0 %v108
    %221 = vmatprep.subr.mxu0 0.0
    %222 = vmatpush2.msra.mxu0 0.0
    %223 = vmatprep.subr.mxu0 0.0
    %224 = vmatpush2.msra.mxu0 0.0
    %225 = vmatprep.subr.mxu0 0.0
    %226 = vmatpush2.msra.mxu0 0.0
    %227 = vmatprep.subr.mxu0 0.0
    %228 = vmatpush2.msra.mxu0 0.0
    %229 = vmatprep.subr.mxu0 0.0
    %230 = vmatpush2.msra.mxu0 0.0
    %231 = vmatprep.subr.mxu0 0.0
    %232 = vmatpush2.msra.mxu0 0.0
    %233 = vmatprep.subr.mxu0 0.0
    %234 = vmatpush2.msra.mxu0 0.0
    %235 = vmatprep.subr.mxu0 0.0
    %236 = vmatpush2.msra.mxu0 0.0
    %237 = vmatprep.subr.mxu0 0.0
    %238 = vmatpush2.msra.mxu0 0.0
    %239 = vmatprep.subr.mxu0 0.0
    %240 = vmatpush2.msra.mxu0 0.0
    %241 = vmatprep.subr.mxu0 0.0
    %242 = vmatpush2.msra.mxu0 0.0
    %243 = vmatprep.subr.mxu0 0.0
    %244 = vmatpush2.msra.mxu0 0.0
    %245 = vmatprep.subr.mxu0 0.0
    %246 = vmatpush2.msra.mxu0 0.0
    %247 = vmatprep.subr.mxu0 0.0
    %248 = vmatpush2.msra.mxu0 0.0
    %249 = vmatprep.subr.mxu0 0.0
    %250 = vmatpush2.msra.mxu0 0.0
    %251 = vmatprep.subr.mxu0 0.0
    %252 = vmatpush2.msra.mxu0 0.0
    %253 = vmatprep.mubr.f32.mxu0 0.0
    %254 = vmatmul.mubr.f32.gmra.mxu0 %v98
    %v255 = vpop.f32.mrf.mxu0
    %v256 = vadd.f32 %v85, %v255
    %v257 = vpop.f32.mrf.mxu0
    %v258 = vadd.f32 %v85, %v257
    %259 = vmatprep.mubr.f32.mxu0 0.0
    %260 = vmatmul.mubr.f32.gmra.mxu0 %v101
    %v261 = vpop.f32.mrf.mxu0
    %v262 = vadd.f32 %v90, %v261
    %v263 = vpop.f32.mrf.mxu0
    %v264 = vadd.f32 %v90, %v263
    %265 = vdwg.mxu0
    %v266 = vmax.f32 %v179, 0.0
    %v267 = vmax.f32 %v181, 0.0
    %v268 = vmax.f32 %v256, 0.0
    %v269 = vmax.f32 %v258, 0.0
    %v270 = vmax.f32 %v185, 0.0
    %v271 = vmax.f32 %v187, 0.0
    %v272 = vmax.f32 %v262, 0.0
    %v273 = vmax.f32 %v264, 0.0
    %v274 = vld [vmem:[%s6] sm:$0xff]
    %275 = vrot.lane.b32.xlu0 %v266, 17
    %v276 = vpop.permute.xlu0 %275
    %277 = vrot.lane.b32.xlu0 %v270, 17
    %v278 = vpop.permute.xlu0 %277
    %279 = vrot.lane.b32.xlu0 %v267, 17
    %v280 = vpop.permute.xlu0 %279
    %281 = vrot.lane.b32.xlu0 %v271, 17
    %v282 = vpop.permute.xlu0 %281
    %283 = vrot.lane.b32.xlu0 %v268, 17
    %v284 = vpop.permute.xlu0 %283
    %285 = vrot.lane.b32.xlu0 %v272, 17
    %v286 = vpop.permute.xlu0 %285
    %287 = vrot.lane.b32.xlu0 %v269, 17
    %v288 = vpop.permute.xlu0 %287
    %289 = vrot.lane.b32.xlu0 %v273, 17
    %v290 = vpop.permute.xlu0 %289
    %v291 = vlaneseq
    %v292 = vand.u32 %v291, 127
    %vm293 = vcmp.lt.s32.totalorder %v292, 17
    %v294 = vsel %vm293, %v284, %v288
    %v295 = vsel %vm293, %v286, %v290
    %v296 = vsel %vm293, %v280, %v284
    %v297 = vsel %vm293, %v282, %v286
    %v298 = vsel %vm293, %v276, %v280
    %v299 = vsel %vm293, %v278, %v282
    %v300 = vsel %vm293, %v288, %v276
    %v301 = vsel %vm293, %v290, %v278
    %v302 = vld [vmem:[%s7] sm:$0xf]
    %v304 = vlaneseq
    %v305 = vshrl.u32 %v304, 7
    %v306 = vsub.s32 0, %v305
    %v307 = vrot.slane %v302, %v306
    %v308 = vlaneseq
    %v309 = vshrl.u32 %v308, 7
    %v310 = vsub.s32 1, %v309
    %v311 = vrot.slane %v302, %v310
    %v312 = vlaneseq
    %v313 = vshrl.u32 %v312, 7
    %v314 = vsub.s32 2, %v313
    %v315 = vrot.slane %v302, %v314
    %v316 = vlaneseq
    %v317 = vshrl.u32 %v316, 7
    %v318 = vsub.s32 3, %v317
    %v319 = vrot.slane %v302, %v318
    %v324 = vmul.f32 %v300, %v307
    %v325 = vmul.f32 %v298, %v311
    %v326 = vmul.f32 %v296, %v315
    %v327 = vmul.f32 %v294, %v319
    %v328 = vmul.f32 %v301, %v307
    %v329 = vmul.f32 %v299, %v311
    %v330 = vmul.f32 %v297, %v315
    %v331 = vmul.f32 %v295, %v319
    %v332 = vld [vmem:[#allocation2] sm:$0xff]
    %vm333 = vcmask 130048
    %v335 = vsel %vm333, %v332, 0
    %337 = vmatprep.subr.mxu0 0.0
    %338 = vmatpush1.msra.mxu0 0.0
    %339 = vmatprep.subr.mxu0 0.0
    %340 = vmatpush1.msra.mxu0 0.0
    %341 = vmatprep.subr.mxu0 0.0
    %342 = vmatpush1.msra.mxu0 0.0
    %343 = vmatprep.subr.mxu0 0.0
    %344 = vmatpush1.msra.mxu0 0.0
    %345 = vmatprep.subr.mxu0 0.0
    %346 = vmatpush1.msra.mxu0 0.0
    %347 = vmatprep.subr.mxu0 0.0
    %348 = vmatpush1.msra.mxu0 0.0
    %349 = vmatprep.subr.mxu0 0.0
    %350 = vmatpush1.msra.mxu0 0.0
    %351 = vmatprep.subr.mxu0 0.0
    %352 = vmatpush1.msra.mxu0 0.0
    %353 = vmatprep.subr.mxu0 0.0
    %354 = vmatpush1.msra.mxu0 0.0
    %355 = vmatprep.subr.mxu0 0.0
    %356 = vmatpush1.msra.mxu0 0.0
    %357 = vmatprep.subr.mxu0 0.0
    %358 = vmatpush1.msra.mxu0 0.0
    %359 = vmatprep.subr.mxu0 0.0
    %360 = vmatpush1.msra.mxu0 0.0
    %361 = vmatprep.subr.mxu0 0.0
    %362 = vmatpush1.msra.mxu0 0.0
    %363 = vmatprep.subr.mxu0 0.0
    %364 = vmatpush1.msra.mxu0 0.0
    %365 = vmatprep.subr.mxu0 %v329
    %366 = vmatpush1.msra.mxu0 %v328
    %367 = vmatprep.subr.mxu0 %v325
    %368 = vmatpush1.msra.mxu0 %v324
    %369 = vmatprep.subr.mxu0 0.0
    %370 = vmatpush2.msra.mxu0 0.0
    %371 = vmatprep.subr.mxu0 0.0
    %372 = vmatpush2.msra.mxu0 0.0
    %373 = vmatprep.subr.mxu0 0.0
    %374 = vmatpush2.msra.mxu0 0.0
    %375 = vmatprep.subr.mxu0 0.0
    %376 = vmatpush2.msra.mxu0 0.0
    %377 = vmatprep.subr.mxu0 0.0
    %378 = vmatpush2.msra.mxu0 0.0
    %379 = vmatprep.subr.mxu0 0.0
    %380 = vmatpush2.msra.mxu0 0.0
    %381 = vmatprep.subr.mxu0 0.0
    %382 = vmatpush2.msra.mxu0 0.0
    %383 = vmatprep.subr.mxu0 0.0
    %384 = vmatpush2.msra.mxu0 0.0
    %385 = vmatprep.subr.mxu0 0.0
    %386 = vmatpush2.msra.mxu0 0.0
    %387 = vmatprep.subr.mxu0 0.0
    %388 = vmatpush2.msra.mxu0 0.0
    %389 = vmatprep.subr.mxu0 0.0
    %390 = vmatpush2.msra.mxu0 0.0
    %391 = vmatprep.subr.mxu0 0.0
    %392 = vmatpush2.msra.mxu0 0.0
    %393 = vmatprep.subr.mxu0 0.0
    %394 = vmatpush2.msra.mxu0 0.0
    %395 = vmatprep.subr.mxu0 0.0
    %396 = vmatpush2.msra.mxu0 0.0
    %397 = vmatprep.subr.mxu0 0.0
    %398 = vmatpush2.msra.mxu0 0.0
    %399 = vmatprep.subr.mxu0 0.0
    %400 = vmatpush2.msra.mxu0 0.0
    %401 = vmatprep.mubr.f32.mxu0 0.0
    %402 = vmatmul.mubr.f32.gmra.mxu0 %v335
    %v403 = vpop.f32.mrf.mxu0
    %v404 = vadd.f32 0.0, %v403
    %v405 = vpop.f32.mrf.mxu0
    %v406 = vadd.f32 0.0, %v405
    %407 = vdwg.mxu0
    %408 = vmatprep.subr.mxu0 0.0
    %409 = vmatpush1.msra.mxu0 0.0
    %410 = vmatprep.subr.mxu0 0.0
    %411 = vmatpush1.msra.mxu0 0.0
    %412 = vmatprep.subr.mxu0 0.0
    %413 = vmatpush1.msra.mxu0 0.0
    %414 = vmatprep.subr.mxu0 0.0
    %415 = vmatpush1.msra.mxu0 0.0
    %416 = vmatprep.subr.mxu0 0.0
    %417 = vmatpush1.msra.mxu0 0.0
    %418 = vmatprep.subr.mxu0 0.0
    %419 = vmatpush1.msra.mxu0 0.0
    %420 = vmatprep.subr.mxu0 0.0
    %421 = vmatpush1.msra.mxu0 0.0
    %422 = vmatprep.subr.mxu0 0.0
    %423 = vmatpush1.msra.mxu0 0.0
    %424 = vmatprep.subr.mxu0 0.0
    %425 = vmatpush1.msra.mxu0 0.0
    %426 = vmatprep.subr.mxu0 0.0
    %427 = vmatpush1.msra.mxu0 0.0
    %428 = vmatprep.subr.mxu0 0.0
    %429 = vmatpush1.msra.mxu0 0.0
    %430 = vmatprep.subr.mxu0 0.0
    %431 = vmatpush1.msra.mxu0 0.0
    %432 = vmatprep.subr.mxu0 0.0
    %433 = vmatpush1.msra.mxu0 0.0
    %434 = vmatprep.subr.mxu0 0.0
    %435 = vmatpush1.msra.mxu0 0.0
    %436 = vmatprep.subr.mxu0 %v331
    %437 = vmatpush1.msra.mxu0 %v330
    %438 = vmatprep.subr.mxu0 %v327
    %439 = vmatpush1.msra.mxu0 %v326
    %440 = vmatprep.subr.mxu0 0.0
    %441 = vmatpush2.msra.mxu0 0.0
    %442 = vmatprep.subr.mxu0 0.0
    %443 = vmatpush2.msra.mxu0 0.0
    %444 = vmatprep.subr.mxu0 0.0
    %445 = vmatpush2.msra.mxu0 0.0
    %446 = vmatprep.subr.mxu0 0.0
    %447 = vmatpush2.msra.mxu0 0.0
    %448 = vmatprep.subr.mxu0 0.0
    %449 = vmatpush2.msra.mxu0 0.0
    %450 = vmatprep.subr.mxu0 0.0
    %451 = vmatpush2.msra.mxu0 0.0
    %452 = vmatprep.subr.mxu0 0.0
    %453 = vmatpush2.msra.mxu0 0.0
    %454 = vmatprep.subr.mxu0 0.0
    %455 = vmatpush2.msra.mxu0 0.0
    %456 = vmatprep.subr.mxu0 0.0
    %457 = vmatpush2.msra.mxu0 0.0
    %458 = vmatprep.subr.mxu0 0.0
    %459 = vmatpush2.msra.mxu0 0.0
    %460 = vmatprep.subr.mxu0 0.0
    %461 = vmatpush2.msra.mxu0 0.0
    %462 = vmatprep.subr.mxu0 0.0
    %463 = vmatpush2.msra.mxu0 0.0
    %464 = vmatprep.subr.mxu0 0.0
    %465 = vmatpush2.msra.mxu0 0.0
    %466 = vmatprep.subr.mxu0 0.0
    %467 = vmatpush2.msra.mxu0 0.0
    %468 = vmatprep.subr.mxu0 0.0
    %469 = vmatpush2.msra.mxu0 0.0
    %470 = vmatprep.subr.mxu0 0.0
    %471 = vmatpush2.msra.mxu0 0.0
    %472 = vmatprep.mubr.f32.mxu0 0.0
    %473 = vmatmul.mubr.f32.gmra.mxu0 %v335
    %v474 = vpop.f32.mrf.mxu0
    %v475 = vadd.f32 0.0, %v474
    %v476 = vpop.f32.mrf.mxu0
    %v477 = vadd.f32 0.0, %v476
    %478 = vdwg.mxu0
    %v481 = vcombine.high %v44, %v44
    %v482 = vcombine.high %v45, %v45
    %v484 = vsel %vm96, %v274, 0
    %v486 = vsel %vm103, %v44, 0
    %v488 = vsel %vm103, %v481, 0
    %v490 = vsel %vm103, %v45, 0
    %v492 = vsel %vm103, %v482, 0
    %494 = vmatprep.subr.mxu0 0.0
    %495 = vmatpush1.msra.mxu0 0.0
    %496 = vmatprep.subr.mxu0 0.0
    %497 = vmatpush1.msra.mxu0 0.0
    %498 = vmatprep.subr.mxu0 0.0
    %499 = vmatpush1.msra.mxu0 0.0
    %500 = vmatprep.subr.mxu0 0.0
    %501 = vmatpush1.msra.mxu0 0.0
    %502 = vmatprep.subr.mxu0 0.0
    %503 = vmatpush1.msra.mxu0 0.0
    %504 = vmatprep.subr.mxu0 0.0
    %505 = vmatpush1.msra.mxu0 0.0
    %506 = vmatprep.subr.mxu0 0.0
    %507 = vmatpush1.msra.mxu0 0.0
    %508 = vmatprep.subr.mxu0 0.0
    %509 = vmatpush1.msra.mxu0 0.0
    %510 = vmatprep.subr.mxu0 0.0
    %511 = vmatpush1.msra.mxu0 0.0
    %512 = vmatprep.subr.mxu0 0.0
    %513 = vmatpush1.msra.mxu0 0.0
    %514 = vmatprep.subr.mxu0 0.0
    %515 = vmatpush1.msra.mxu0 0.0
    %516 = vmatprep.subr.mxu0 0.0
    %517 = vmatpush1.msra.mxu0 0.0
    %518 = vmatprep.subr.mxu0 0.0
    %519 = vmatpush1.msra.mxu0 0.0
    %520 = vmatprep.subr.mxu0 0.0
    %521 = vmatpush1.msra.mxu0 0.0
    %522 = vmatprep.subr.mxu0 0.0
    %523 = vmatpush1.msra.mxu0 0.0
    %524 = vmatprep.subr.mxu0 %v488
    %525 = vmatpush1.msra.mxu0 %v486
    %526 = vmatprep.subr.mxu0 0.0
    %527 = vmatpush2.msra.mxu0 0.0
    %528 = vmatprep.subr.mxu0 0.0
    %529 = vmatpush2.msra.mxu0 0.0
    %530 = vmatprep.subr.mxu0 0.0
    %531 = vmatpush2.msra.mxu0 0.0
    %532 = vmatprep.subr.mxu0 0.0
    %533 = vmatpush2.msra.mxu0 0.0
    %534 = vmatprep.subr.mxu0 0.0
    %535 = vmatpush2.msra.mxu0 0.0
    %536 = vmatprep.subr.mxu0 0.0
    %537 = vmatpush2.msra.mxu0 0.0
    %538 = vmatprep.subr.mxu0 0.0
    %539 = vmatpush2.msra.mxu0 0.0
    %540 = vmatprep.subr.mxu0 0.0
    %541 = vmatpush2.msra.mxu0 0.0
    %542 = vmatprep.subr.mxu0 0.0
    %543 = vmatpush2.msra.mxu0 0.0
    %544 = vmatprep.subr.mxu0 0.0
    %545 = vmatpush2.msra.mxu0 0.0
    %546 = vmatprep.subr.mxu0 0.0
    %547 = vmatpush2.msra.mxu0 0.0
    %548 = vmatprep.subr.mxu0 0.0
    %549 = vmatpush2.msra.mxu0 0.0
    %550 = vmatprep.subr.mxu0 0.0
    %551 = vmatpush2.msra.mxu0 0.0
    %552 = vmatprep.subr.mxu0 0.0
    %553 = vmatpush2.msra.mxu0 0.0
    %554 = vmatprep.subr.mxu0 0.0
    %555 = vmatpush2.msra.mxu0 0.0
    %556 = vmatprep.subr.mxu0 0.0
    %557 = vmatpush2.msra.mxu0 0.0
    %558 = vmatprep.mubr.f32.mxu0 0.0
    %559 = vmatmul.mubr.f32.gmra.mxu0 %v484
    %v560 = vpop.f32.mrf.mxu0
    %v561 = vadd.f32 %v404, %v560
    %v562 = vpop.f32.mrf.mxu0
    %v563 = vadd.f32 %v406, %v562
    %564 = vdwg.mxu0
    %565 = vmatprep.subr.mxu0 0.0
    %566 = vmatpush1.msra.mxu0 0.0
    %567 = vmatprep.subr.mxu0 0.0
    %568 = vmatpush1.msra.mxu0 0.0
    %569 = vmatprep.subr.mxu0 0.0
    %570 = vmatpush1.msra.mxu0 0.0
    %571 = vmatprep.subr.mxu0 0.0
    %572 = vmatpush1.msra.mxu0 0.0
    %573 = vmatprep.subr.mxu0 0.0
    %574 = vmatpush1.msra.mxu0 0.0
    %575 = vmatprep.subr.mxu0 0.0
    %576 = vmatpush1.msra.mxu0 0.0
    %577 = vmatprep.subr.mxu0 0.0
    %578 = vmatpush1.msra.mxu0 0.0
    %579 = vmatprep.subr.mxu0 0.0
    %580 = vmatpush1.msra.mxu0 0.0
    %581 = vmatprep.subr.mxu0 0.0
    %582 = vmatpush1.msra.mxu0 0.0
    %583 = vmatprep.subr.mxu0 0.0
    %584 = vmatpush1.msra.mxu0 0.0
    %585 = vmatprep.subr.mxu0 0.0
    %586 = vmatpush1.msra.mxu0 0.0
    %587 = vmatprep.subr.mxu0 0.0
    %588 = vmatpush1.msra.mxu0 0.0
    %589 = vmatprep.subr.mxu0 0.0
    %590 = vmatpush1.msra.mxu0 0.0
    %591 = vmatprep.subr.mxu0 0.0
    %592 = vmatpush1.msra.mxu0 0.0
    %593 = vmatprep.subr.mxu0 0.0
    %594 = vmatpush1.msra.mxu0 0.0
    %595 = vmatprep.subr.mxu0 %v492
    %596 = vmatpush1.msra.mxu0 %v490
    %597 = vmatprep.subr.mxu0 0.0
    %598 = vmatpush2.msra.mxu0 0.0
    %599 = vmatprep.subr.mxu0 0.0
    %600 = vmatpush2.msra.mxu0 0.0
    %601 = vmatprep.subr.mxu0 0.0
    %602 = vmatpush2.msra.mxu0 0.0
    %603 = vmatprep.subr.mxu0 0.0
    %604 = vmatpush2.msra.mxu0 0.0
    %605 = vmatprep.subr.mxu0 0.0
    %606 = vmatpush2.msra.mxu0 0.0
    %607 = vmatprep.subr.mxu0 0.0
    %608 = vmatpush2.msra.mxu0 0.0
    %609 = vmatprep.subr.mxu0 0.0
    %610 = vmatpush2.msra.mxu0 0.0
    %611 = vmatprep.subr.mxu0 0.0
    %612 = vmatpush2.msra.mxu0 0.0
    %613 = vmatprep.subr.mxu0 0.0
    %614 = vmatpush2.msra.mxu0 0.0
    %615 = vmatprep.subr.mxu0 0.0
    %616 = vmatpush2.msra.mxu0 0.0
    %617 = vmatprep.subr.mxu0 0.0
    %618 = vmatpush2.msra.mxu0 0.0
    %619 = vmatprep.subr.mxu0 0.0
    %620 = vmatpush2.msra.mxu0 0.0
    %621 = vmatprep.subr.mxu0 0.0
    %622 = vmatpush2.msra.mxu0 0.0
    %623 = vmatprep.subr.mxu0 0.0
    %624 = vmatpush2.msra.mxu0 0.0
    %625 = vmatprep.subr.mxu0 0.0
    %626 = vmatpush2.msra.mxu0 0.0
    %627 = vmatprep.subr.mxu0 0.0
    %628 = vmatpush2.msra.mxu0 0.0
    %629 = vmatprep.mubr.f32.mxu0 0.0
    %630 = vmatmul.mubr.f32.gmra.mxu0 %v484
    %v631 = vpop.f32.mrf.mxu0
    %v632 = vadd.f32 %v475, %v631
    %v633 = vpop.f32.mrf.mxu0
    %v634 = vadd.f32 %v477, %v633
    %635 = vdwg.mxu0
    %636 = vrot.lane.b32.xlu0 %v266, 16
    %v637 = vpop.permute.xlu0 %636
    %638 = vrot.lane.b32.xlu0 %v270, 16
    %v639 = vpop.permute.xlu0 %638
    %640 = vrot.lane.b32.xlu0 %v267, 16
    %v641 = vpop.permute.xlu0 %640
    %642 = vrot.lane.b32.xlu0 %v271, 16
    %v643 = vpop.permute.xlu0 %642
    %644 = vrot.lane.b32.xlu0 %v268, 16
    %v645 = vpop.permute.xlu0 %644
    %646 = vrot.lane.b32.xlu0 %v272, 16
    %v647 = vpop.permute.xlu0 %646
    %648 = vrot.lane.b32.xlu0 %v269, 16
    %v649 = vpop.permute.xlu0 %648
    %650 = vrot.lane.b32.xlu0 %v273, 16
    %v651 = vpop.permute.xlu0 %650
    %vm652 = vcmp.lt.s32.totalorder %v292, 16
    %v653 = vsel %vm652, %v645, %v649
    %v654 = vsel %vm652, %v647, %v651
    %v655 = vsel %vm652, %v641, %v645
    %v656 = vsel %vm652, %v643, %v647
    %v657 = vsel %vm652, %v637, %v641
    %v658 = vsel %vm652, %v639, %v643
    %v659 = vsel %vm652, %v649, %v637
    %v660 = vsel %vm652, %v651, %v639
    %s661 = scalar_lea.vmem %s7, 4
    %v662 = vld [vmem:[%s661] sm:$0xf]
    %v664 = vlaneseq
    %v665 = vshrl.u32 %v664, 7
    %v666 = vsub.s32 0, %v665
    %v667 = vrot.slane %v662, %v666
    %v668 = vlaneseq
    %v669 = vshrl.u32 %v668, 7
    %v670 = vsub.s32 1, %v669
    %v671 = vrot.slane %v662, %v670
    %v672 = vlaneseq
    %v673 = vshrl.u32 %v672, 7
    %v674 = vsub.s32 2, %v673
    %v675 = vrot.slane %v662, %v674
    %v676 = vlaneseq
    %v677 = vshrl.u32 %v676, 7
    %v678 = vsub.s32 3, %v677
    %v679 = vrot.slane %v662, %v678
    %v684 = vmul.f32 %v659, %v667
    %v685 = vmul.f32 %v657, %v671
    %v686 = vmul.f32 %v655, %v675
    %v687 = vmul.f32 %v653, %v679
    %v688 = vmul.f32 %v660, %v667
    %v689 = vmul.f32 %v658, %v671
    %v690 = vmul.f32 %v656, %v675
    %v691 = vmul.f32 %v654, %v679
    %s692 = scalar_lea.vmem [#allocation2], 8
    %v693 = vld [vmem:[%s692] sm:$0xff]
    %v695 = vsel %vm333, %v693, 0
    %697 = vmatprep.subr.mxu0 0.0
    %698 = vmatpush1.msra.mxu0 0.0
    %699 = vmatprep.subr.mxu0 0.0
    %700 = vmatpush1.msra.mxu0 0.0
    %701 = vmatprep.subr.mxu0 0.0
    %702 = vmatpush1.msra.mxu0 0.0
    %703 = vmatprep.subr.mxu0 0.0
    %704 = vmatpush1.msra.mxu0 0.0
    %705 = vmatprep.subr.mxu0 0.0
    %706 = vmatpush1.msra.mxu0 0.0
    %707 = vmatprep.subr.mxu0 0.0
    %708 = vmatpush1.msra.mxu0 0.0
    %709 = vmatprep.subr.mxu0 0.0
    %710 = vmatpush1.msra.mxu0 0.0
    %711 = vmatprep.subr.mxu0 0.0
    %712 = vmatpush1.msra.mxu0 0.0
    %713 = vmatprep.subr.mxu0 0.0
    %714 = vmatpush1.msra.mxu0 0.0
    %715 = vmatprep.subr.mxu0 0.0
    %716 = vmatpush1.msra.mxu0 0.0
    %717 = vmatprep.subr.mxu0 0.0
    %718 = vmatpush1.msra.mxu0 0.0
    %719 = vmatprep.subr.mxu0 0.0
    %720 = vmatpush1.msra.mxu0 0.0
    %721 = vmatprep.subr.mxu0 0.0
    %722 = vmatpush1.msra.mxu0 0.0
    %723 = vmatprep.subr.mxu0 0.0
    %724 = vmatpush1.msra.mxu0 0.0
    %725 = vmatprep.subr.mxu0 %v689
    %726 = vmatpush1.msra.mxu0 %v688
    %727 = vmatprep.subr.mxu0 %v685
    %728 = vmatpush1.msra.mxu0 %v684
    %729 = vmatprep.subr.mxu0 0.0
    %730 = vmatpush2.msra.mxu0 0.0
    %731 = vmatprep.subr.mxu0 0.0
    %732 = vmatpush2.msra.mxu0 0.0
    %733 = vmatprep.subr.mxu0 0.0
    %734 = vmatpush2.msra.mxu0 0.0
    %735 = vmatprep.subr.mxu0 0.0
    %736 = vmatpush2.msra.mxu0 0.0
    %737 = vmatprep.subr.mxu0 0.0
    %738 = vmatpush2.msra.mxu0 0.0
    %739 = vmatprep.subr.mxu0 0.0
    %740 = vmatpush2.msra.mxu0 0.0
    %741 = vmatprep.subr.mxu0 0.0
    %742 = vmatpush2.msra.mxu0 0.0
    %743 = vmatprep.subr.mxu0 0.0
    %744 = vmatpush2.msra.mxu0 0.0
    %745 = vmatprep.subr.mxu0 0.0
    %746 = vmatpush2.msra.mxu0 0.0
    %747 = vmatprep.subr.mxu0 0.0
    %748 = vmatpush2.msra.mxu0 0.0
    %749 = vmatprep.subr.mxu0 0.0
    %750 = vmatpush2.msra.mxu0 0.0
    %751 = vmatprep.subr.mxu0 0.0
    %752 = vmatpush2.msra.mxu0 0.0
    %753 = vmatprep.subr.mxu0 0.0
    %754 = vmatpush2.msra.mxu0 0.0
    %755 = vmatprep.subr.mxu0 0.0
    %756 = vmatpush2.msra.mxu0 0.0
    %757 = vmatprep.subr.mxu0 0.0
    %758 = vmatpush2.msra.mxu0 0.0
    %759 = vmatprep.subr.mxu0 0.0
    %760 = vmatpush2.msra.mxu0 0.0
    %761 = vmatprep.mubr.f32.mxu0 0.0
    %762 = vmatmul.mubr.f32.gmra.mxu0 %v695
    %v763 = vpop.f32.mrf.mxu0
    %v764 = vadd.f32 0.0, %v763
    %v765 = vpop.f32.mrf.mxu0
    %v766 = vadd.f32 0.0, %v765
    %767 = vdwg.mxu0
    %768 = vmatprep.subr.mxu0 0.0
    %769 = vmatpush1.msra.mxu0 0.0
    %770 = vmatprep.subr.mxu0 0.0
    %771 = vmatpush1.msra.mxu0 0.0
    %772 = vmatprep.subr.mxu0 0.0
    %773 = vmatpush1.msra.mxu0 0.0
    %774 = vmatprep.subr.mxu0 0.0
    %775 = vmatpush1.msra.mxu0 0.0
    %776 = vmatprep.subr.mxu0 0.0
    %777 = vmatpush1.msra.mxu0 0.0
    %778 = vmatprep.subr.mxu0 0.0
    %779 = vmatpush1.msra.mxu0 0.0
    %780 = vmatprep.subr.mxu0 0.0
    %781 = vmatpush1.msra.mxu0 0.0
    %782 = vmatprep.subr.mxu0 0.0
    %783 = vmatpush1.msra.mxu0 0.0
    %784 = vmatprep.subr.mxu0 0.0
    %785 = vmatpush1.msra.mxu0 0.0
    %786 = vmatprep.subr.mxu0 0.0
    %787 = vmatpush1.msra.mxu0 0.0
    %788 = vmatprep.subr.mxu0 0.0
    %789 = vmatpush1.msra.mxu0 0.0
    %790 = vmatprep.subr.mxu0 0.0
    %791 = vmatpush1.msra.mxu0 0.0
    %792 = vmatprep.subr.mxu0 0.0
    %793 = vmatpush1.msra.mxu0 0.0
    %794 = vmatprep.subr.mxu0 0.0
    %795 = vmatpush1.msra.mxu0 0.0
    %796 = vmatprep.subr.mxu0 %v691
    %797 = vmatpush1.msra.mxu0 %v690
    %798 = vmatprep.subr.mxu0 %v687
    %799 = vmatpush1.msra.mxu0 %v686
    %800 = vmatprep.subr.mxu0 0.0
    %801 = vmatpush2.msra.mxu0 0.0
    %802 = vmatprep.subr.mxu0 0.0
    %803 = vmatpush2.msra.mxu0 0.0
    %804 = vmatprep.subr.mxu0 0.0
    %805 = vmatpush2.msra.mxu0 0.0
    %806 = vmatprep.subr.mxu0 0.0
    %807 = vmatpush2.msra.mxu0 0.0
    %808 = vmatprep.subr.mxu0 0.0
    %809 = vmatpush2.msra.mxu0 0.0
    %810 = vmatprep.subr.mxu0 0.0
    %811 = vmatpush2.msra.mxu0 0.0
    %812 = vmatprep.subr.mxu0 0.0
    %813 = vmatpush2.msra.mxu0 0.0
    %814 = vmatprep.subr.mxu0 0.0
    %815 = vmatpush2.msra.mxu0 0.0
    %816 = vmatprep.subr.mxu0 0.0
    %817 = vmatpush2.msra.mxu0 0.0
    %818 = vmatprep.subr.mxu0 0.0
    %819 = vmatpush2.msra.mxu0 0.0
    %820 = vmatprep.subr.mxu0 0.0
    %821 = vmatpush2.msra.mxu0 0.0
    %822 = vmatprep.subr.mxu0 0.0
    %823 = vmatpush2.msra.mxu0 0.0
    %824 = vmatprep.subr.mxu0 0.0
    %825 = vmatpush2.msra.mxu0 0.0
    %826 = vmatprep.subr.mxu0 0.0
    %827 = vmatpush2.msra.mxu0 0.0
    %828 = vmatprep.subr.mxu0 0.0
    %829 = vmatpush2.msra.mxu0 0.0
    %830 = vmatprep.subr.mxu0 0.0
    %831 = vmatpush2.msra.mxu0 0.0
    %832 = vmatprep.mubr.f32.mxu0 0.0
    %833 = vmatmul.mubr.f32.gmra.mxu0 %v695
    %v834 = vpop.f32.mrf.mxu0
    %v835 = vadd.f32 0.0, %v834
    %v836 = vpop.f32.mrf.mxu0
    %v837 = vadd.f32 0.0, %v836
    %838 = vdwg.mxu0
    %v839 = vadd.f32 %v561, %v764
    %v840 = vadd.f32 %v563, %v766
    %v841 = vadd.f32 %v632, %v835
    %v842 = vadd.f32 %v634, %v837
    %843 = vrot.lane.b32.xlu0 %v266, 15
    %v844 = vpop.permute.xlu0 %843
    %845 = vrot.lane.b32.xlu0 %v270, 15
    %v846 = vpop.permute.xlu0 %845
    %847 = vrot.lane.b32.xlu0 %v267, 15
    %v848 = vpop.permute.xlu0 %847
    %849 = vrot.lane.b32.xlu0 %v271, 15
    %v850 = vpop.permute.xlu0 %849
    %851 = vrot.lane.b32.xlu0 %v268, 15
    %v852 = vpop.permute.xlu0 %851
    %853 = vrot.lane.b32.xlu0 %v272, 15
    %v854 = vpop.permute.xlu0 %853
    %855 = vrot.lane.b32.xlu0 %v269, 15
    %v856 = vpop.permute.xlu0 %855
    %857 = vrot.lane.b32.xlu0 %v273, 15
    %v858 = vpop.permute.xlu0 %857
    %vm859 = vcmp.lt.s32.totalorder %v292, 15
    %v860 = vsel %vm859, %v852, %v856
    %v861 = vsel %vm859, %v854, %v858
    %v862 = vsel %vm859, %v848, %v852
    %v863 = vsel %vm859, %v850, %v854
    %v864 = vsel %vm859, %v844, %v848
    %v865 = vsel %vm859, %v846, %v850
    %v866 = vsel %vm859, %v856, %v844
    %v867 = vsel %vm859, %v858, %v846
    %s868 = scalar_lea.vmem %s7, 8
    %v869 = vld [vmem:[%s868] sm:$0xf]
    %v871 = vlaneseq
    %v872 = vshrl.u32 %v871, 7
    %v873 = vsub.s32 0, %v872
    %v874 = vrot.slane %v869, %v873
    %v875 = vlaneseq
    %v876 = vshrl.u32 %v875, 7
    %v877 = vsub.s32 1, %v876
    %v878 = vrot.slane %v869, %v877
    %v879 = vlaneseq
    %v880 = vshrl.u32 %v879, 7
    %v881 = vsub.s32 2, %v880
    %v882 = vrot.slane %v869, %v881
    %v883 = vlaneseq
    %v884 = vshrl.u32 %v883, 7
    %v885 = vsub.s32 3, %v884
    %v886 = vrot.slane %v869, %v885
    %v891 = vmul.f32 %v866, %v874
    %v892 = vmul.f32 %v864, %v878
    %v893 = vmul.f32 %v862, %v882
    %v894 = vmul.f32 %v860, %v886
    %v895 = vmul.f32 %v867, %v874
    %v896 = vmul.f32 %v865, %v878
    %v897 = vmul.f32 %v863, %v882
    %v898 = vmul.f32 %v861, %v886
    %s899 = scalar_lea.vmem [#allocation2], 16
    %v900 = vld [vmem:[%s899] sm:$0xff]
    %v902 = vsel %vm333, %v900, 0
    %904 = vmatprep.subr.mxu0 0.0
    %905 = vmatpush1.msra.mxu0 0.0
    %906 = vmatprep.subr.mxu0 0.0
    %907 = vmatpush1.msra.mxu0 0.0
    %908 = vmatprep.subr.mxu0 0.0
    %909 = vmatpush1.msra.mxu0 0.0
    %910 = vmatprep.subr.mxu0 0.0
    %911 = vmatpush1.msra.mxu0 0.0
    %912 = vmatprep.subr.mxu0 0.0
    %913 = vmatpush1.msra.mxu0 0.0
    %914 = vmatprep.subr.mxu0 0.0
    %915 = vmatpush1.msra.mxu0 0.0
    %916 = vmatprep.subr.mxu0 0.0
    %917 = vmatpush1.msra.mxu0 0.0
    %918 = vmatprep.subr.mxu0 0.0
    %919 = vmatpush1.msra.mxu0 0.0
    %920 = vmatprep.subr.mxu0 0.0
    %921 = vmatpush1.msra.mxu0 0.0
    %922 = vmatprep.subr.mxu0 0.0
    %923 = vmatpush1.msra.mxu0 0.0
    %924 = vmatprep.subr.mxu0 0.0
    %925 = vmatpush1.msra.mxu0 0.0
    %926 = vmatprep.subr.mxu0 0.0
    %927 = vmatpush1.msra.mxu0 0.0
    %928 = vmatprep.subr.mxu0 0.0
    %929 = vmatpush1.msra.mxu0 0.0
    %930 = vmatprep.subr.mxu0 0.0
    %931 = vmatpush1.msra.mxu0 0.0
    %932 = vmatprep.subr.mxu0 %v896
    %933 = vmatpush1.msra.mxu0 %v895
    %934 = vmatprep.subr.mxu0 %v892
    %935 = vmatpush1.msra.mxu0 %v891
    %936 = vmatprep.subr.mxu0 0.0
    %937 = vmatpush2.msra.mxu0 0.0
    %938 = vmatprep.subr.mxu0 0.0
    %939 = vmatpush2.msra.mxu0 0.0
    %940 = vmatprep.subr.mxu0 0.0
    %941 = vmatpush2.msra.mxu0 0.0
    %942 = vmatprep.subr.mxu0 0.0
    %943 = vmatpush2.msra.mxu0 0.0
    %944 = vmatprep.subr.mxu0 0.0
    %945 = vmatpush2.msra.mxu0 0.0
    %946 = vmatprep.subr.mxu0 0.0
    %947 = vmatpush2.msra.mxu0 0.0
    %948 = vmatprep.subr.mxu0 0.0
    %949 = vmatpush2.msra.mxu0 0.0
    %950 = vmatprep.subr.mxu0 0.0
    %951 = vmatpush2.msra.mxu0 0.0
    %952 = vmatprep.subr.mxu0 0.0
    %953 = vmatpush2.msra.mxu0 0.0
    %954 = vmatprep.subr.mxu0 0.0
    %955 = vmatpush2.msra.mxu0 0.0
    %956 = vmatprep.subr.mxu0 0.0
    %957 = vmatpush2.msra.mxu0 0.0
    %958 = vmatprep.subr.mxu0 0.0
    %959 = vmatpush2.msra.mxu0 0.0
    %960 = vmatprep.subr.mxu0 0.0
    %961 = vmatpush2.msra.mxu0 0.0
    %962 = vmatprep.subr.mxu0 0.0
    %963 = vmatpush2.msra.mxu0 0.0
    %964 = vmatprep.subr.mxu0 0.0
    %965 = vmatpush2.msra.mxu0 0.0
    %966 = vmatprep.subr.mxu0 0.0
    %967 = vmatpush2.msra.mxu0 0.0
    %968 = vmatprep.mubr.f32.mxu0 0.0
    %969 = vmatmul.mubr.f32.gmra.mxu0 %v902
    %v970 = vpop.f32.mrf.mxu0
    %v971 = vadd.f32 0.0, %v970
    %v972 = vpop.f32.mrf.mxu0
    %v973 = vadd.f32 0.0, %v972
    %974 = vdwg.mxu0
    %975 = vmatprep.subr.mxu0 0.0
    %976 = vmatpush1.msra.mxu0 0.0
    %977 = vmatprep.subr.mxu0 0.0
    %978 = vmatpush1.msra.mxu0 0.0
    %979 = vmatprep.subr.mxu0 0.0
    %980 = vmatpush1.msra.mxu0 0.0
    %981 = vmatprep.subr.mxu0 0.0
    %982 = vmatpush1.msra.mxu0 0.0
    %983 = vmatprep.subr.mxu0 0.0
    %984 = vmatpush1.msra.mxu0 0.0
    %985 = vmatprep.subr.mxu0 0.0
    %986 = vmatpush1.msra.mxu0 0.0
    %987 = vmatprep.subr.mxu0 0.0
    %988 = vmatpush1.msra.mxu0 0.0
    %989 = vmatprep.subr.mxu0 0.0
    %990 = vmatpush1.msra.mxu0 0.0
    %991 = vmatprep.subr.mxu0 0.0
    %992 = vmatpush1.msra.mxu0 0.0
    %993 = vmatprep.subr.mxu0 0.0
    %994 = vmatpush1.msra.mxu0 0.0
    %995 = vmatprep.subr.mxu0 0.0
    %996 = vmatpush1.msra.mxu0 0.0
    %997 = vmatprep.subr.mxu0 0.0
    %998 = vmatpush1.msra.mxu0 0.0
    %999 = vmatprep.subr.mxu0 0.0
    %1000 = vmatpush1.msra.mxu0 0.0
    %1001 = vmatprep.subr.mxu0 0.0
    %1002 = vmatpush1.msra.mxu0 0.0
    %1003 = vmatprep.subr.mxu0 %v898
    %1004 = vmatpush1.msra.mxu0 %v897
    %1005 = vmatprep.subr.mxu0 %v894
    %1006 = vmatpush1.msra.mxu0 %v893
    %1007 = vmatprep.subr.mxu0 0.0
    %1008 = vmatpush2.msra.mxu0 0.0
    %1009 = vmatprep.subr.mxu0 0.0
    %1010 = vmatpush2.msra.mxu0 0.0
    %1011 = vmatprep.subr.mxu0 0.0
    %1012 = vmatpush2.msra.mxu0 0.0
    %1013 = vmatprep.subr.mxu0 0.0
    %1014 = vmatpush2.msra.mxu0 0.0
    %1015 = vmatprep.subr.mxu0 0.0
    %1016 = vmatpush2.msra.mxu0 0.0
    %1017 = vmatprep.subr.mxu0 0.0
    %1018 = vmatpush2.msra.mxu0 0.0
    %1019 = vmatprep.subr.mxu0 0.0
    %1020 = vmatpush2.msra.mxu0 0.0
    %1021 = vmatprep.subr.mxu0 0.0
    %1022 = vmatpush2.msra.mxu0 0.0
    %1023 = vmatprep.subr.mxu0 0.0
    %1024 = vmatpush2.msra.mxu0 0.0
    %1025 = vmatprep.subr.mxu0 0.0
    %1026 = vmatpush2.msra.mxu0 0.0
    %1027 = vmatprep.subr.mxu0 0.0
    %1028 = vmatpush2.msra.mxu0 0.0
    %1029 = vmatprep.subr.mxu0 0.0
    %1030 = vmatpush2.msra.mxu0 0.0
    %1031 = vmatprep.subr.mxu0 0.0
    %1032 = vmatpush2.msra.mxu0 0.0
    %1033 = vmatprep.subr.mxu0 0.0
    %1034 = vmatpush2.msra.mxu0 0.0
    %1035 = vmatprep.subr.mxu0 0.0
    %1036 = vmatpush2.msra.mxu0 0.0
    %1037 = vmatprep.subr.mxu0 0.0
    %1038 = vmatpush2.msra.mxu0 0.0
    %1039 = vmatprep.mubr.f32.mxu0 0.0
    %1040 = vmatmul.mubr.f32.gmra.mxu0 %v902
    %v1041 = vpop.f32.mrf.mxu0
    %v1042 = vadd.f32 0.0, %v1041
    %v1043 = vpop.f32.mrf.mxu0
    %v1044 = vadd.f32 0.0, %v1043
    %1045 = vdwg.mxu0
    %v1046 = vadd.f32 %v839, %v971
    %v1047 = vadd.f32 %v840, %v973
    %v1048 = vadd.f32 %v841, %v1042
    %v1049 = vadd.f32 %v842, %v1044
    %1050 = vrot.lane.b32.xlu0 %v266, 1
    %v1051 = vpop.permute.xlu0 %1050
    %1052 = vrot.lane.b32.xlu0 %v270, 1
    %v1053 = vpop.permute.xlu0 %1052
    %1054 = vrot.lane.b32.xlu0 %v267, 1
    %v1055 = vpop.permute.xlu0 %1054
    %1056 = vrot.lane.b32.xlu0 %v271, 1
    %v1057 = vpop.permute.xlu0 %1056
    %1058 = vrot.lane.b32.xlu0 %v268, 1
    %v1059 = vpop.permute.xlu0 %1058
    %1060 = vrot.lane.b32.xlu0 %v272, 1
    %v1061 = vpop.permute.xlu0 %1060
    %1062 = vrot.lane.b32.xlu0 %v269, 1
    %v1063 = vpop.permute.xlu0 %1062
    %1064 = vrot.lane.b32.xlu0 %v273, 1
    %v1065 = vpop.permute.xlu0 %1064
    %vm1066 = vcmp.lt.s32.totalorder %v292, 1
    %v1067 = vsel %vm1066, %v1059, %v1063
    %v1068 = vsel %vm1066, %v1061, %v1065
    %v1069 = vsel %vm1066, %v1055, %v1059
    %v1070 = vsel %vm1066, %v1057, %v1061
    %v1071 = vsel %vm1066, %v1051, %v1055
    %v1072 = vsel %vm1066, %v1053, %v1057
    %v1073 = vsel %vm1066, %v1063, %v1051
    %v1074 = vsel %vm1066, %v1065, %v1053
    %s1075 = scalar_lea.vmem %s7, 12
    %v1076 = vld [vmem:[%s1075] sm:$0xf]
    %v1078 = vlaneseq
    %v1079 = vshrl.u32 %v1078, 7
    %v1080 = vsub.s32 0, %v1079
    %v1081 = vrot.slane %v1076, %v1080
    %v1082 = vlaneseq
    %v1083 = vshrl.u32 %v1082, 7
    %v1084 = vsub.s32 1, %v1083
    %v1085 = vrot.slane %v1076, %v1084
    %v1086 = vlaneseq
    %v1087 = vshrl.u32 %v1086, 7
    %v1088 = vsub.s32 2, %v1087
    %v1089 = vrot.slane %v1076, %v1088
    %v1090 = vlaneseq
    %v1091 = vshrl.u32 %v1090, 7
    %v1092 = vsub.s32 3, %v1091
    %v1093 = vrot.slane %v1076, %v1092
    %v1098 = vmul.f32 %v1073, %v1081
    %v1099 = vmul.f32 %v1071, %v1085
    %v1100 = vmul.f32 %v1069, %v1089
    %v1101 = vmul.f32 %v1067, %v1093
    %v1102 = vmul.f32 %v1074, %v1081
    %v1103 = vmul.f32 %v1072, %v1085
    %v1104 = vmul.f32 %v1070, %v1089
    %v1105 = vmul.f32 %v1068, %v1093
    %s1106 = scalar_lea.vmem [#allocation2], 24
    %v1107 = vld [vmem:[%s1106] sm:$0xff]
    %v1109 = vsel %vm333, %v1107, 0
    %1111 = vmatprep.subr.mxu0 0.0
    %1112 = vmatpush1.msra.mxu0 0.0
    %1113 = vmatprep.subr.mxu0 0.0
    %1114 = vmatpush1.msra.mxu0 0.0
    %1115 = vmatprep.subr.mxu0 0.0
    %1116 = vmatpush1.msra.mxu0 0.0
    %1117 = vmatprep.subr.mxu0 0.0
    %1118 = vmatpush1.msra.mxu0 0.0
    %1119 = vmatprep.subr.mxu0 0.0
    %1120 = vmatpush1.msra.mxu0 0.0
    %1121 = vmatprep.subr.mxu0 0.0
    %1122 = vmatpush1.msra.mxu0 0.0
    %1123 = vmatprep.subr.mxu0 0.0
    %1124 = vmatpush1.msra.mxu0 0.0
    %1125 = vmatprep.subr.mxu0 0.0
    %1126 = vmatpush1.msra.mxu0 0.0
    %1127 = vmatprep.subr.mxu0 0.0
    %1128 = vmatpush1.msra.mxu0 0.0
    %1129 = vmatprep.subr.mxu0 0.0
    %1130 = vmatpush1.msra.mxu0 0.0
    %1131 = vmatprep.subr.mxu0 0.0
    %1132 = vmatpush1.msra.mxu0 0.0
    %1133 = vmatprep.subr.mxu0 0.0
    %1134 = vmatpush1.msra.mxu0 0.0
    %1135 = vmatprep.subr.mxu0 0.0
    %1136 = vmatpush1.msra.mxu0 0.0
    %1137 = vmatprep.subr.mxu0 0.0
    %1138 = vmatpush1.msra.mxu0 0.0
    %1139 = vmatprep.subr.mxu0 %v1103
    %1140 = vmatpush1.msra.mxu0 %v1102
    %1141 = vmatprep.subr.mxu0 %v1099
    %1142 = vmatpush1.msra.mxu0 %v1098
    %1143 = vmatprep.subr.mxu0 0.0
    %1144 = vmatpush2.msra.mxu0 0.0
    %1145 = vmatprep.subr.mxu0 0.0
    %1146 = vmatpush2.msra.mxu0 0.0
    %1147 = vmatprep.subr.mxu0 0.0
    %1148 = vmatpush2.msra.mxu0 0.0
    %1149 = vmatprep.subr.mxu0 0.0
    %1150 = vmatpush2.msra.mxu0 0.0
    %1151 = vmatprep.subr.mxu0 0.0
    %1152 = vmatpush2.msra.mxu0 0.0
    %1153 = vmatprep.subr.mxu0 0.0
    %1154 = vmatpush2.msra.mxu0 0.0
    %1155 = vmatprep.subr.mxu0 0.0
    %1156 = vmatpush2.msra.mxu0 0.0
    %1157 = vmatprep.subr.mxu0 0.0
    %1158 = vmatpush2.msra.mxu0 0.0
    %1159 = vmatprep.subr.mxu0 0.0
    %1160 = vmatpush2.msra.mxu0 0.0
    %1161 = vmatprep.subr.mxu0 0.0
    %1162 = vmatpush2.msra.mxu0 0.0
    %1163 = vmatprep.subr.mxu0 0.0
    %1164 = vmatpush2.msra.mxu0 0.0
    %1165 = vmatprep.subr.mxu0 0.0
    %1166 = vmatpush2.msra.mxu0 0.0
    %1167 = vmatprep.subr.mxu0 0.0
    %1168 = vmatpush2.msra.mxu0 0.0
    %1169 = vmatprep.subr.mxu0 0.0
    %1170 = vmatpush2.msra.mxu0 0.0
    %1171 = vmatprep.subr.mxu0 0.0
    %1172 = vmatpush2.msra.mxu0 0.0
    %1173 = vmatprep.subr.mxu0 0.0
    %1174 = vmatpush2.msra.mxu0 0.0
    %1175 = vmatprep.mubr.f32.mxu0 0.0
    %1176 = vmatmul.mubr.f32.gmra.mxu0 %v1109
    %v1177 = vpop.f32.mrf.mxu0
    %v1178 = vadd.f32 0.0, %v1177
    %v1179 = vpop.f32.mrf.mxu0
    %v1180 = vadd.f32 0.0, %v1179
    %1181 = vdwg.mxu0
    %1182 = vmatprep.subr.mxu0 0.0
    %1183 = vmatpush1.msra.mxu0 0.0
    %1184 = vmatprep.subr.mxu0 0.0
    %1185 = vmatpush1.msra.mxu0 0.0
    %1186 = vmatprep.subr.mxu0 0.0
    %1187 = vmatpush1.msra.mxu0 0.0
    %1188 = vmatprep.subr.mxu0 0.0
    %1189 = vmatpush1.msra.mxu0 0.0
    %1190 = vmatprep.subr.mxu0 0.0
    %1191 = vmatpush1.msra.mxu0 0.0
    %1192 = vmatprep.subr.mxu0 0.0
    %1193 = vmatpush1.msra.mxu0 0.0
    %1194 = vmatprep.subr.mxu0 0.0
    %1195 = vmatpush1.msra.mxu0 0.0
    %1196 = vmatprep.subr.mxu0 0.0
    %1197 = vmatpush1.msra.mxu0 0.0
    %1198 = vmatprep.subr.mxu0 0.0
    %1199 = vmatpush1.msra.mxu0 0.0
    %1200 = vmatprep.subr.mxu0 0.0
    %1201 = vmatpush1.msra.mxu0 0.0
    %1202 = vmatprep.subr.mxu0 0.0
    %1203 = vmatpush1.msra.mxu0 0.0
    %1204 = vmatprep.subr.mxu0 0.0
    %1205 = vmatpush1.msra.mxu0 0.0
    %1206 = vmatprep.subr.mxu0 0.0
    %1207 = vmatpush1.msra.mxu0 0.0
    %1208 = vmatprep.subr.mxu0 0.0
    %1209 = vmatpush1.msra.mxu0 0.0
    %1210 = vmatprep.subr.mxu0 %v1105
    %1211 = vmatpush1.msra.mxu0 %v1104
    %1212 = vmatprep.subr.mxu0 %v1101
    %1213 = vmatpush1.msra.mxu0 %v1100
    %1214 = vmatprep.subr.mxu0 0.0
    %1215 = vmatpush2.msra.mxu0 0.0
    %1216 = vmatprep.subr.mxu0 0.0
    %1217 = vmatpush2.msra.mxu0 0.0
    %1218 = vmatprep.subr.mxu0 0.0
    %1219 = vmatpush2.msra.mxu0 0.0
    %1220 = vmatprep.subr.mxu0 0.0
    %1221 = vmatpush2.msra.mxu0 0.0
    %1222 = vmatprep.subr.mxu0 0.0
    %1223 = vmatpush2.msra.mxu0 0.0
    %1224 = vmatprep.subr.mxu0 0.0
    %1225 = vmatpush2.msra.mxu0 0.0
    %1226 = vmatprep.subr.mxu0 0.0
    %1227 = vmatpush2.msra.mxu0 0.0
    %1228 = vmatprep.subr.mxu0 0.0
    %1229 = vmatpush2.msra.mxu0 0.0
    %1230 = vmatprep.subr.mxu0 0.0
    %1231 = vmatpush2.msra.mxu0 0.0
    %1232 = vmatprep.subr.mxu0 0.0
    %1233 = vmatpush2.msra.mxu0 0.0
    %1234 = vmatprep.subr.mxu0 0.0
    %1235 = vmatpush2.msra.mxu0 0.0
    %1236 = vmatprep.subr.mxu0 0.0
    %1237 = vmatpush2.msra.mxu0 0.0
    %1238 = vmatprep.subr.mxu0 0.0
    %1239 = vmatpush2.msra.mxu0 0.0
    %1240 = vmatprep.subr.mxu0 0.0
    %1241 = vmatpush2.msra.mxu0 0.0
    %1242 = vmatprep.subr.mxu0 0.0
    %1243 = vmatpush2.msra.mxu0 0.0
    %1244 = vmatprep.subr.mxu0 0.0
    %1245 = vmatpush2.msra.mxu0 0.0
    %1246 = vmatprep.mubr.f32.mxu0 0.0
    %1247 = vmatmul.mubr.f32.gmra.mxu0 %v1109
    %v1248 = vpop.f32.mrf.mxu0
    %v1249 = vadd.f32 0.0, %v1248
    %v1250 = vpop.f32.mrf.mxu0
    %v1251 = vadd.f32 0.0, %v1250
    %1252 = vdwg.mxu0
    %v1253 = vadd.f32 %v1046, %v1178
    %v1254 = vadd.f32 %v1047, %v1180
    %v1255 = vadd.f32 %v1048, %v1249
    %v1256 = vadd.f32 %v1049, %v1251
    %s1257 = scalar_lea.vmem [#allocation2], 32
    %v1258 = vld [vmem:[%s1257] sm:$0xff]
    %v1260 = vsel %vm333, %v1258, 0
    %1262 = vmatprep.subr.mxu0 0.0
    %1263 = vmatpush1.msra.mxu0 0.0
    %1264 = vmatprep.subr.mxu0 0.0
    %1265 = vmatpush1.msra.mxu0 0.0
    %1266 = vmatprep.subr.mxu0 0.0
    %1267 = vmatpush1.msra.mxu0 0.0
    %1268 = vmatprep.subr.mxu0 0.0
    %1269 = vmatpush1.msra.mxu0 0.0
    %1270 = vmatprep.subr.mxu0 0.0
    %1271 = vmatpush1.msra.mxu0 0.0
    %1272 = vmatprep.subr.mxu0 0.0
    %1273 = vmatpush1.msra.mxu0 0.0
    %1274 = vmatprep.subr.mxu0 0.0
    %1275 = vmatpush1.msra.mxu0 0.0
    %1276 = vmatprep.subr.mxu0 0.0
    %1277 = vmatpush1.msra.mxu0 0.0
    %1278 = vmatprep.subr.mxu0 0.0
    %1279 = vmatpush1.msra.mxu0 0.0
    %1280 = vmatprep.subr.mxu0 0.0
    %1281 = vmatpush1.msra.mxu0 0.0
    %1282 = vmatprep.subr.mxu0 0.0
    %1283 = vmatpush1.msra.mxu0 0.0
    %1284 = vmatprep.subr.mxu0 0.0
    %1285 = vmatpush1.msra.mxu0 0.0
    %1286 = vmatprep.subr.mxu0 0.0
    %1287 = vmatpush1.msra.mxu0 0.0
    %1288 = vmatprep.subr.mxu0 0.0
    %1289 = vmatpush1.msra.mxu0 0.0
    %1290 = vmatprep.subr.mxu0 %v271
    %1291 = vmatpush1.msra.mxu0 %v270
    %1292 = vmatprep.subr.mxu0 %v267
    %1293 = vmatpush1.msra.mxu0 %v266
    %1294 = vmatprep.subr.mxu0 0.0
    %1295 = vmatpush2.msra.mxu0 0.0
    %1296 = vmatprep.subr.mxu0 0.0
    %1297 = vmatpush2.msra.mxu0 0.0
    %1298 = vmatprep.subr.mxu0 0.0
    %1299 = vmatpush2.msra.mxu0 0.0
    %1300 = vmatprep.subr.mxu0 0.0
    %1301 = vmatpush2.msra.mxu0 0.0
    %1302 = vmatprep.subr.mxu0 0.0
    %1303 = vmatpush2.msra.mxu0 0.0
    %1304 = vmatprep.subr.mxu0 0.0
    %1305 = vmatpush2.msra.mxu0 0.0
    %1306 = vmatprep.subr.mxu0 0.0
    %1307 = vmatpush2.msra.mxu0 0.0
    %1308 = vmatprep.subr.mxu0 0.0
    %1309 = vmatpush2.msra.mxu0 0.0
    %1310 = vmatprep.subr.mxu0 0.0
    %1311 = vmatpush2.msra.mxu0 0.0
    %1312 = vmatprep.subr.mxu0 0.0
    %1313 = vmatpush2.msra.mxu0 0.0
    %1314 = vmatprep.subr.mxu0 0.0
    %1315 = vmatpush2.msra.mxu0 0.0
    %1316 = vmatprep.subr.mxu0 0.0
    %1317 = vmatpush2.msra.mxu0 0.0
    %1318 = vmatprep.subr.mxu0 0.0
    %1319 = vmatpush2.msra.mxu0 0.0
    %1320 = vmatprep.subr.mxu0 0.0
    %1321 = vmatpush2.msra.mxu0 0.0
    %1322 = vmatprep.subr.mxu0 0.0
    %1323 = vmatpush2.msra.mxu0 0.0
    %1324 = vmatprep.subr.mxu0 0.0
    %1325 = vmatpush2.msra.mxu0 0.0
    %1326 = vmatprep.mubr.f32.mxu0 0.0
    %1327 = vmatmul.mubr.f32.gmra.mxu0 %v1260
    %v1328 = vpop.f32.mrf.mxu0
    %v1329 = vadd.f32 0.0, %v1328
    %v1330 = vpop.f32.mrf.mxu0
    %v1331 = vadd.f32 0.0, %v1330
    %1332 = vdwg.mxu0
    %1333 = vmatprep.subr.mxu0 0.0
    %1334 = vmatpush1.msra.mxu0 0.0
    %1335 = vmatprep.subr.mxu0 0.0
    %1336 = vmatpush1.msra.mxu0 0.0
    %1337 = vmatprep.subr.mxu0 0.0
    %1338 = vmatpush1.msra.mxu0 0.0
    %1339 = vmatprep.subr.mxu0 0.0
    %1340 = vmatpush1.msra.mxu0 0.0
    %1341 = vmatprep.subr.mxu0 0.0
    %1342 = vmatpush1.msra.mxu0 0.0
    %1343 = vmatprep.subr.mxu0 0.0
    %1344 = vmatpush1.msra.mxu0 0.0
    %1345 = vmatprep.subr.mxu0 0.0
    %1346 = vmatpush1.msra.mxu0 0.0
    %1347 = vmatprep.subr.mxu0 0.0
    %1348 = vmatpush1.msra.mxu0 0.0
    %1349 = vmatprep.subr.mxu0 0.0
    %1350 = vmatpush1.msra.mxu0 0.0
    %1351 = vmatprep.subr.mxu0 0.0
    %1352 = vmatpush1.msra.mxu0 0.0
    %1353 = vmatprep.subr.mxu0 0.0
    %1354 = vmatpush1.msra.mxu0 0.0
    %1355 = vmatprep.subr.mxu0 0.0
    %1356 = vmatpush1.msra.mxu0 0.0
    %1357 = vmatprep.subr.mxu0 0.0
    %1358 = vmatpush1.msra.mxu0 0.0
    %1359 = vmatprep.subr.mxu0 0.0
    %1360 = vmatpush1.msra.mxu0 0.0
    %1361 = vmatprep.subr.mxu0 %v273
    %1362 = vmatpush1.msra.mxu0 %v272
    %1363 = vmatprep.subr.mxu0 %v269
    %1364 = vmatpush1.msra.mxu0 %v268
    %1365 = vmatprep.subr.mxu0 0.0
    %1366 = vmatpush2.msra.mxu0 0.0
    %1367 = vmatprep.subr.mxu0 0.0
    %1368 = vmatpush2.msra.mxu0 0.0
    %1369 = vmatprep.subr.mxu0 0.0
    %1370 = vmatpush2.msra.mxu0 0.0
    %1371 = vmatprep.subr.mxu0 0.0
    %1372 = vmatpush2.msra.mxu0 0.0
    %1373 = vmatprep.subr.mxu0 0.0
    %1374 = vmatpush2.msra.mxu0 0.0
    %1375 = vmatprep.subr.mxu0 0.0
    %1376 = vmatpush2.msra.mxu0 0.0
    %1377 = vmatprep.subr.mxu0 0.0
    %1378 = vmatpush2.msra.mxu0 0.0
    %1379 = vmatprep.subr.mxu0 0.0
    %1380 = vmatpush2.msra.mxu0 0.0
    %1381 = vmatprep.subr.mxu0 0.0
    %1382 = vmatpush2.msra.mxu0 0.0
    %1383 = vmatprep.subr.mxu0 0.0
    %1384 = vmatpush2.msra.mxu0 0.0
    %1385 = vmatprep.subr.mxu0 0.0
    %1386 = vmatpush2.msra.mxu0 0.0
    %1387 = vmatprep.subr.mxu0 0.0
    %1388 = vmatpush2.msra.mxu0 0.0
    %1389 = vmatprep.subr.mxu0 0.0
    %1390 = vmatpush2.msra.mxu0 0.0
    %1391 = vmatprep.subr.mxu0 0.0
    %1392 = vmatpush2.msra.mxu0 0.0
    %1393 = vmatprep.subr.mxu0 0.0
    %1394 = vmatpush2.msra.mxu0 0.0
    %1395 = vmatprep.subr.mxu0 0.0
    %1396 = vmatpush2.msra.mxu0 0.0
    %1397 = vmatprep.mubr.f32.mxu0 0.0
    %1398 = vmatmul.mubr.f32.gmra.mxu0 %v1260
    %v1399 = vpop.f32.mrf.mxu0
    %v1400 = vadd.f32 0.0, %v1399
    %v1401 = vpop.f32.mrf.mxu0
    %v1402 = vadd.f32 0.0, %v1401
    %1403 = vdwg.mxu0
    %v1404 = vadd.f32 %v1253, %v1329
    %v1405 = vadd.f32 %v1254, %v1331
    %v1406 = vadd.f32 %v1255, %v1400
    %v1407 = vadd.f32 %v1256, %v1402
    %1408 = vrot.lane.b32.xlu0 %v266, 127
    %v1409 = vpop.permute.xlu0 %1408
    %1410 = vrot.lane.b32.xlu0 %v270, 127
    %v1411 = vpop.permute.xlu0 %1410
    %1412 = vrot.lane.b32.xlu0 %v267, 127
    %v1413 = vpop.permute.xlu0 %1412
    %1414 = vrot.lane.b32.xlu0 %v271, 127
    %v1415 = vpop.permute.xlu0 %1414
    %1416 = vrot.lane.b32.xlu0 %v268, 127
    %v1417 = vpop.permute.xlu0 %1416
    %1418 = vrot.lane.b32.xlu0 %v272, 127
    %v1419 = vpop.permute.xlu0 %1418
    %1420 = vrot.lane.b32.xlu0 %v269, 127
    %v1421 = vpop.permute.xlu0 %1420
    %1422 = vrot.lane.b32.xlu0 %v273, 127
    %v1423 = vpop.permute.xlu0 %1422
    %vm1424 = vcmp.lt.s32.totalorder %v292, 127
    %v1425 = vsel %vm1424, %v1417, %v1421
    %v1426 = vsel %vm1424, %v1419, %v1423
    %v1427 = vsel %vm1424, %v1413, %v1417
    %v1428 = vsel %vm1424, %v1415, %v1419
    %v1429 = vsel %vm1424, %v1409, %v1413
    %v1430 = vsel %vm1424, %v1411, %v1415
    %v1431 = vsel %vm1424, %v1421, %v1409
    %v1432 = vsel %vm1424, %v1423, %v1411
    %s1433 = scalar_lea.vmem %s7, 20
    %v1434 = vld [vmem:[%s1433] sm:$0xf]
    %v1436 = vlaneseq
    %v1437 = vshrl.u32 %v1436, 7
    %v1438 = vsub.s32 0, %v1437
    %v1439 = vrot.slane %v1434, %v1438
    %v1440 = vlaneseq
    %v1441 = vshrl.u32 %v1440, 7
    %v1442 = vsub.s32 1, %v1441
    %v1443 = vrot.slane %v1434, %v1442
    %v1444 = vlaneseq
    %v1445 = vshrl.u32 %v1444, 7
    %v1446 = vsub.s32 2, %v1445
    %v1447 = vrot.slane %v1434, %v1446
    %v1448 = vlaneseq
    %v1449 = vshrl.u32 %v1448, 7
    %v1450 = vsub.s32 3, %v1449
    %v1451 = vrot.slane %v1434, %v1450
    %v1456 = vmul.f32 %v1429, %v1439
    %v1457 = vmul.f32 %v1427, %v1443
    %v1458 = vmul.f32 %v1425, %v1447
    %v1459 = vmul.f32 %v1431, %v1451
    %v1460 = vmul.f32 %v1430, %v1439
    %v1461 = vmul.f32 %v1428, %v1443
    %v1462 = vmul.f32 %v1426, %v1447
    %v1463 = vmul.f32 %v1432, %v1451
    %s1464 = scalar_lea.vmem [#allocation2], 40
    %v1465 = vld [vmem:[%s1464] sm:$0xff]
    %v1467 = vsel %vm333, %v1465, 0
    %1469 = vmatprep.subr.mxu0 0.0
    %1470 = vmatpush1.msra.mxu0 0.0
    %1471 = vmatprep.subr.mxu0 0.0
    %1472 = vmatpush1.msra.mxu0 0.0
    %1473 = vmatprep.subr.mxu0 0.0
    %1474 = vmatpush1.msra.mxu0 0.0
    %1475 = vmatprep.subr.mxu0 0.0
    %1476 = vmatpush1.msra.mxu0 0.0
    %1477 = vmatprep.subr.mxu0 0.0
    %1478 = vmatpush1.msra.mxu0 0.0
    %1479 = vmatprep.subr.mxu0 0.0
    %1480 = vmatpush1.msra.mxu0 0.0
    %1481 = vmatprep.subr.mxu0 0.0
    %1482 = vmatpush1.msra.mxu0 0.0
    %1483 = vmatprep.subr.mxu0 0.0
    %1484 = vmatpush1.msra.mxu0 0.0
    %1485 = vmatprep.subr.mxu0 0.0
    %1486 = vmatpush1.msra.mxu0 0.0
    %1487 = vmatprep.subr.mxu0 0.0
    %1488 = vmatpush1.msra.mxu0 0.0
    %1489 = vmatprep.subr.mxu0 0.0
    %1490 = vmatpush1.msra.mxu0 0.0
    %1491 = vmatprep.subr.mxu0 0.0
    %1492 = vmatpush1.msra.mxu0 0.0
    %1493 = vmatprep.subr.mxu0 0.0
    %1494 = vmatpush1.msra.mxu0 0.0
    %1495 = vmatprep.subr.mxu0 0.0
    %1496 = vmatpush1.msra.mxu0 0.0
    %1497 = vmatprep.subr.mxu0 %v1461
    %1498 = vmatpush1.msra.mxu0 %v1460
    %1499 = vmatprep.subr.mxu0 %v1457
    %1500 = vmatpush1.msra.mxu0 %v1456
    %1501 = vmatprep.subr.mxu0 0.0
    %1502 = vmatpush2.msra.mxu0 0.0
    %1503 = vmatprep.subr.mxu0 0.0
    %1504 = vmatpush2.msra.mxu0 0.0
    %1505 = vmatprep.subr.mxu0 0.0
    %1506 = vmatpush2.msra.mxu0 0.0
    %1507 = vmatprep.subr.mxu0 0.0
    %1508 = vmatpush2.msra.mxu0 0.0
    %1509 = vmatprep.subr.mxu0 0.0
    %1510 = vmatpush2.msra.mxu0 0.0
    %1511 = vmatprep.subr.mxu0 0.0
    %1512 = vmatpush2.msra.mxu0 0.0
    %1513 = vmatprep.subr.mxu0 0.0
    %1514 = vmatpush2.msra.mxu0 0.0
    %1515 = vmatprep.subr.mxu0 0.0
    %1516 = vmatpush2.msra.mxu0 0.0
    %1517 = vmatprep.subr.mxu0 0.0
    %1518 = vmatpush2.msra.mxu0 0.0
    %1519 = vmatprep.subr.mxu0 0.0
    %1520 = vmatpush2.msra.mxu0 0.0
    %1521 = vmatprep.subr.mxu0 0.0
    %1522 = vmatpush2.msra.mxu0 0.0
    %1523 = vmatprep.subr.mxu0 0.0
    %1524 = vmatpush2.msra.mxu0 0.0
    %1525 = vmatprep.subr.mxu0 0.0
    %1526 = vmatpush2.msra.mxu0 0.0
    %1527 = vmatprep.subr.mxu0 0.0
    %1528 = vmatpush2.msra.mxu0 0.0
    %1529 = vmatprep.subr.mxu0 0.0
    %1530 = vmatpush2.msra.mxu0 0.0
    %1531 = vmatprep.subr.mxu0 0.0
    %1532 = vmatpush2.msra.mxu0 0.0
    %1533 = vmatprep.mubr.f32.mxu0 0.0
    %1534 = vmatmul.mubr.f32.gmra.mxu0 %v1467
    %v1535 = vpop.f32.mrf.mxu0
    %v1536 = vadd.f32 0.0, %v1535
    %v1537 = vpop.f32.mrf.mxu0
    %v1538 = vadd.f32 0.0, %v1537
    %1539 = vdwg.mxu0
    %1540 = vmatprep.subr.mxu0 0.0
    %1541 = vmatpush1.msra.mxu0 0.0
    %1542 = vmatprep.subr.mxu0 0.0
    %1543 = vmatpush1.msra.mxu0 0.0
    %1544 = vmatprep.subr.mxu0 0.0
    %1545 = vmatpush1.msra.mxu0 0.0
    %1546 = vmatprep.subr.mxu0 0.0
    %1547 = vmatpush1.msra.mxu0 0.0
    %1548 = vmatprep.subr.mxu0 0.0
    %1549 = vmatpush1.msra.mxu0 0.0
    %1550 = vmatprep.subr.mxu0 0.0
    %1551 = vmatpush1.msra.mxu0 0.0
    %1552 = vmatprep.subr.mxu0 0.0
    %1553 = vmatpush1.msra.mxu0 0.0
    %1554 = vmatprep.subr.mxu0 0.0
    %1555 = vmatpush1.msra.mxu0 0.0
    %1556 = vmatprep.subr.mxu0 0.0
    %1557 = vmatpush1.msra.mxu0 0.0
    %1558 = vmatprep.subr.mxu0 0.0
    %1559 = vmatpush1.msra.mxu0 0.0
    %1560 = vmatprep.subr.mxu0 0.0
    %1561 = vmatpush1.msra.mxu0 0.0
    %1562 = vmatprep.subr.mxu0 0.0
    %1563 = vmatpush1.msra.mxu0 0.0
    %1564 = vmatprep.subr.mxu0 0.0
    %1565 = vmatpush1.msra.mxu0 0.0
    %1566 = vmatprep.subr.mxu0 0.0
    %1567 = vmatpush1.msra.mxu0 0.0
    %1568 = vmatprep.subr.mxu0 %v1463
    %1569 = vmatpush1.msra.mxu0 %v1462
    %1570 = vmatprep.subr.mxu0 %v1459
    %1571 = vmatpush1.msra.mxu0 %v1458
    %1572 = vmatprep.subr.mxu0 0.0
    %1573 = vmatpush2.msra.mxu0 0.0
    %1574 = vmatprep.subr.mxu0 0.0
    %1575 = vmatpush2.msra.mxu0 0.0
    %1576 = vmatprep.subr.mxu0 0.0
    %1577 = vmatpush2.msra.mxu0 0.0
    %1578 = vmatprep.subr.mxu0 0.0
    %1579 = vmatpush2.msra.mxu0 0.0
    %1580 = vmatprep.subr.mxu0 0.0
    %1581 = vmatpush2.msra.mxu0 0.0
    %1582 = vmatprep.subr.mxu0 0.0
    %1583 = vmatpush2.msra.mxu0 0.0
    %1584 = vmatprep.subr.mxu0 0.0
    %1585 = vmatpush2.msra.mxu0 0.0
    %1586 = vmatprep.subr.mxu0 0.0
    %1587 = vmatpush2.msra.mxu0 0.0
    %1588 = vmatprep.subr.mxu0 0.0
    %1589 = vmatpush2.msra.mxu0 0.0
    %1590 = vmatprep.subr.mxu0 0.0
    %1591 = vmatpush2.msra.mxu0 0.0
    %1592 = vmatprep.subr.mxu0 0.0
    %1593 = vmatpush2.msra.mxu0 0.0
    %1594 = vmatprep.subr.mxu0 0.0
    %1595 = vmatpush2.msra.mxu0 0.0
    %1596 = vmatprep.subr.mxu0 0.0
    %1597 = vmatpush2.msra.mxu0 0.0
    %1598 = vmatprep.subr.mxu0 0.0
    %1599 = vmatpush2.msra.mxu0 0.0
    %1600 = vmatprep.subr.mxu0 0.0
    %1601 = vmatpush2.msra.mxu0 0.0
    %1602 = vmatprep.subr.mxu0 0.0
    %1603 = vmatpush2.msra.mxu0 0.0
    %1604 = vmatprep.mubr.f32.mxu0 0.0
    %1605 = vmatmul.mubr.f32.gmra.mxu0 %v1467
    %v1606 = vpop.f32.mrf.mxu0
    %v1607 = vadd.f32 0.0, %v1606
    %v1608 = vpop.f32.mrf.mxu0
    %v1609 = vadd.f32 0.0, %v1608
    %1610 = vdwg.mxu0
    %v1611 = vadd.f32 %v1404, %v1536
    %v1612 = vadd.f32 %v1405, %v1538
    %v1613 = vadd.f32 %v1406, %v1607
    %v1614 = vadd.f32 %v1407, %v1609
    %1615 = vrot.lane.b32.xlu0 %v266, 113
    %v1616 = vpop.permute.xlu0 %1615
    %1617 = vrot.lane.b32.xlu0 %v270, 113
    %v1618 = vpop.permute.xlu0 %1617
    %1619 = vrot.lane.b32.xlu0 %v267, 113
    %v1620 = vpop.permute.xlu0 %1619
    %1621 = vrot.lane.b32.xlu0 %v271, 113
    %v1622 = vpop.permute.xlu0 %1621
    %1623 = vrot.lane.b32.xlu0 %v268, 113
    %v1624 = vpop.permute.xlu0 %1623
    %1625 = vrot.lane.b32.xlu0 %v272, 113
    %v1626 = vpop.permute.xlu0 %1625
    %1627 = vrot.lane.b32.xlu0 %v269, 113
    %v1628 = vpop.permute.xlu0 %1627
    %1629 = vrot.lane.b32.xlu0 %v273, 113
    %v1630 = vpop.permute.xlu0 %1629
    %vm1631 = vcmp.lt.s32.totalorder %v292, 113
    %v1632 = vsel %vm1631, %v1624, %v1628
    %v1633 = vsel %vm1631, %v1626, %v1630
    %v1634 = vsel %vm1631, %v1620, %v1624
    %v1635 = vsel %vm1631, %v1622, %v1626
    %v1636 = vsel %vm1631, %v1616, %v1620
    %v1637 = vsel %vm1631, %v1618, %v1622
    %v1638 = vsel %vm1631, %v1628, %v1616
    %v1639 = vsel %vm1631, %v1630, %v1618
    %s1640 = scalar_lea.vmem %s7, 24
    %v1641 = vld [vmem:[%s1640] sm:$0xf]
    %v1643 = vlaneseq
    %v1644 = vshrl.u32 %v1643, 7
    %v1645 = vsub.s32 0, %v1644
    %v1646 = vrot.slane %v1641, %v1645
    %v1647 = vlaneseq
    %v1648 = vshrl.u32 %v1647, 7
    %v1649 = vsub.s32 1, %v1648
    %v1650 = vrot.slane %v1641, %v1649
    %v1651 = vlaneseq
    %v1652 = vshrl.u32 %v1651, 7
    %v1653 = vsub.s32 2, %v1652
    %v1654 = vrot.slane %v1641, %v1653
    %v1655 = vlaneseq
    %v1656 = vshrl.u32 %v1655, 7
    %v1657 = vsub.s32 3, %v1656
    %v1658 = vrot.slane %v1641, %v1657
    %v1663 = vmul.f32 %v1636, %v1646
    %v1664 = vmul.f32 %v1634, %v1650
    %v1665 = vmul.f32 %v1632, %v1654
    %v1666 = vmul.f32 %v1638, %v1658
    %v1667 = vmul.f32 %v1637, %v1646
    %v1668 = vmul.f32 %v1635, %v1650
    %v1669 = vmul.f32 %v1633, %v1654
    %v1670 = vmul.f32 %v1639, %v1658
    %s1671 = scalar_lea.vmem [#allocation2], 48
    %v1672 = vld [vmem:[%s1671] sm:$0xff]
    %v1674 = vsel %vm333, %v1672, 0
    %1676 = vmatprep.subr.mxu0 0.0
    %1677 = vmatpush1.msra.mxu0 0.0
    %1678 = vmatprep.subr.mxu0 0.0
    %1679 = vmatpush1.msra.mxu0 0.0
    %1680 = vmatprep.subr.mxu0 0.0
    %1681 = vmatpush1.msra.mxu0 0.0
    %1682 = vmatprep.subr.mxu0 0.0
    %1683 = vmatpush1.msra.mxu0 0.0
    %1684 = vmatprep.subr.mxu0 0.0
    %1685 = vmatpush1.msra.mxu0 0.0
    %1686 = vmatprep.subr.mxu0 0.0
    %1687 = vmatpush1.msra.mxu0 0.0
    %1688 = vmatprep.subr.mxu0 0.0
    %1689 = vmatpush1.msra.mxu0 0.0
    %1690 = vmatprep.subr.mxu0 0.0
    %1691 = vmatpush1.msra.mxu0 0.0
    %1692 = vmatprep.subr.mxu0 0.0
    %1693 = vmatpush1.msra.mxu0 0.0
    %1694 = vmatprep.subr.mxu0 0.0
    %1695 = vmatpush1.msra.mxu0 0.0
    %1696 = vmatprep.subr.mxu0 0.0
    %1697 = vmatpush1.msra.mxu0 0.0
    %1698 = vmatprep.subr.mxu0 0.0
    %1699 = vmatpush1.msra.mxu0 0.0
    %1700 = vmatprep.subr.mxu0 0.0
    %1701 = vmatpush1.msra.mxu0 0.0
    %1702 = vmatprep.subr.mxu0 0.0
    %1703 = vmatpush1.msra.mxu0 0.0
    %1704 = vmatprep.subr.mxu0 %v1668
    %1705 = vmatpush1.msra.mxu0 %v1667
    %1706 = vmatprep.subr.mxu0 %v1664
    %1707 = vmatpush1.msra.mxu0 %v1663
    %1708 = vmatprep.subr.mxu0 0.0
    %1709 = vmatpush2.msra.mxu0 0.0
    %1710 = vmatprep.subr.mxu0 0.0
    %1711 = vmatpush2.msra.mxu0 0.0
    %1712 = vmatprep.subr.mxu0 0.0
    %1713 = vmatpush2.msra.mxu0 0.0
    %1714 = vmatprep.subr.mxu0 0.0
    %1715 = vmatpush2.msra.mxu0 0.0
    %1716 = vmatprep.subr.mxu0 0.0
    %1717 = vmatpush2.msra.mxu0 0.0
    %1718 = vmatprep.subr.mxu0 0.0
    %1719 = vmatpush2.msra.mxu0 0.0
    %1720 = vmatprep.subr.mxu0 0.0
    %1721 = vmatpush2.msra.mxu0 0.0
    %1722 = vmatprep.subr.mxu0 0.0
    %1723 = vmatpush2.msra.mxu0 0.0
    %1724 = vmatprep.subr.mxu0 0.0
    %1725 = vmatpush2.msra.mxu0 0.0
    %1726 = vmatprep.subr.mxu0 0.0
    %1727 = vmatpush2.msra.mxu0 0.0
    %1728 = vmatprep.subr.mxu0 0.0
    %1729 = vmatpush2.msra.mxu0 0.0
    %1730 = vmatprep.subr.mxu0 0.0
    %1731 = vmatpush2.msra.mxu0 0.0
    %1732 = vmatprep.subr.mxu0 0.0
    %1733 = vmatpush2.msra.mxu0 0.0
    %1734 = vmatprep.subr.mxu0 0.0
    %1735 = vmatpush2.msra.mxu0 0.0
    %1736 = vmatprep.subr.mxu0 0.0
    %1737 = vmatpush2.msra.mxu0 0.0
    %1738 = vmatprep.subr.mxu0 0.0
    %1739 = vmatpush2.msra.mxu0 0.0
    %1740 = vmatprep.mubr.f32.mxu0 0.0
    %1741 = vmatmul.mubr.f32.gmra.mxu0 %v1674
    %v1742 = vpop.f32.mrf.mxu0
    %v1743 = vadd.f32 0.0, %v1742
    %v1744 = vpop.f32.mrf.mxu0
    %v1745 = vadd.f32 0.0, %v1744
    %1746 = vdwg.mxu0
    %1747 = vmatprep.subr.mxu0 0.0
    %1748 = vmatpush1.msra.mxu0 0.0
    %1749 = vmatprep.subr.mxu0 0.0
    %1750 = vmatpush1.msra.mxu0 0.0
    %1751 = vmatprep.subr.mxu0 0.0
    %1752 = vmatpush1.msra.mxu0 0.0
    %1753 = vmatprep.subr.mxu0 0.0
    %1754 = vmatpush1.msra.mxu0 0.0
    %1755 = vmatprep.subr.mxu0 0.0
    %1756 = vmatpush1.msra.mxu0 0.0
    %1757 = vmatprep.subr.mxu0 0.0
    %1758 = vmatpush1.msra.mxu0 0.0
    %1759 = vmatprep.subr.mxu0 0.0
    %1760 = vmatpush1.msra.mxu0 0.0
    %1761 = vmatprep.subr.mxu0 0.0
    %1762 = vmatpush1.msra.mxu0 0.0
    %1763 = vmatprep.subr.mxu0 0.0
    %1764 = vmatpush1.msra.mxu0 0.0
    %1765 = vmatprep.subr.mxu0 0.0
    %1766 = vmatpush1.msra.mxu0 0.0
    %1767 = vmatprep.subr.mxu0 0.0
    %1768 = vmatpush1.msra.mxu0 0.0
    %1769 = vmatprep.subr.mxu0 0.0
    %1770 = vmatpush1.msra.mxu0 0.0
    %1771 = vmatprep.subr.mxu0 0.0
    %1772 = vmatpush1.msra.mxu0 0.0
    %1773 = vmatprep.subr.mxu0 0.0
    %1774 = vmatpush1.msra.mxu0 0.0
    %1775 = vmatprep.subr.mxu0 %v1670
    %1776 = vmatpush1.msra.mxu0 %v1669
    %1777 = vmatprep.subr.mxu0 %v1666
    %1778 = vmatpush1.msra.mxu0 %v1665
    %1779 = vmatprep.subr.mxu0 0.0
    %1780 = vmatpush2.msra.mxu0 0.0
    %1781 = vmatprep.subr.mxu0 0.0
    %1782 = vmatpush2.msra.mxu0 0.0
    %1783 = vmatprep.subr.mxu0 0.0
    %1784 = vmatpush2.msra.mxu0 0.0
    %1785 = vmatprep.subr.mxu0 0.0
    %1786 = vmatpush2.msra.mxu0 0.0
    %1787 = vmatprep.subr.mxu0 0.0
    %1788 = vmatpush2.msra.mxu0 0.0
    %1789 = vmatprep.subr.mxu0 0.0
    %1790 = vmatpush2.msra.mxu0 0.0
    %1791 = vmatprep.subr.mxu0 0.0
    %1792 = vmatpush2.msra.mxu0 0.0
    %1793 = vmatprep.subr.mxu0 0.0
    %1794 = vmatpush2.msra.mxu0 0.0
    %1795 = vmatprep.subr.mxu0 0.0
    %1796 = vmatpush2.msra.mxu0 0.0
    %1797 = vmatprep.subr.mxu0 0.0
    %1798 = vmatpush2.msra.mxu0 0.0
    %1799 = vmatprep.subr.mxu0 0.0
    %1800 = vmatpush2.msra.mxu0 0.0
    %1801 = vmatprep.subr.mxu0 0.0
    %1802 = vmatpush2.msra.mxu0 0.0
    %1803 = vmatprep.subr.mxu0 0.0
    %1804 = vmatpush2.msra.mxu0 0.0
    %1805 = vmatprep.subr.mxu0 0.0
    %1806 = vmatpush2.msra.mxu0 0.0
    %1807 = vmatprep.subr.mxu0 0.0
    %1808 = vmatpush2.msra.mxu0 0.0
    %1809 = vmatprep.subr.mxu0 0.0
    %1810 = vmatpush2.msra.mxu0 0.0
    %1811 = vmatprep.mubr.f32.mxu0 0.0
    %1812 = vmatmul.mubr.f32.gmra.mxu0 %v1674
    %v1813 = vpop.f32.mrf.mxu0
    %v1814 = vadd.f32 0.0, %v1813
    %v1815 = vpop.f32.mrf.mxu0
    %v1816 = vadd.f32 0.0, %v1815
    %1817 = vdwg.mxu0
    %v1818 = vadd.f32 %v1611, %v1743
    %v1819 = vadd.f32 %v1612, %v1745
    %v1820 = vadd.f32 %v1613, %v1814
    %v1821 = vadd.f32 %v1614, %v1816
    %1822 = vrot.lane.b32.xlu0 %v266, 112
    %v1823 = vpop.permute.xlu0 %1822
    %1824 = vrot.lane.b32.xlu0 %v270, 112
    %v1825 = vpop.permute.xlu0 %1824
    %1826 = vrot.lane.b32.xlu0 %v267, 112
    %v1827 = vpop.permute.xlu0 %1826
    %1828 = vrot.lane.b32.xlu0 %v271, 112
    %v1829 = vpop.permute.xlu0 %1828
    %1830 = vrot.lane.b32.xlu0 %v268, 112
    %v1831 = vpop.permute.xlu0 %1830
    %1832 = vrot.lane.b32.xlu0 %v272, 112
    %v1833 = vpop.permute.xlu0 %1832
    %1834 = vrot.lane.b32.xlu0 %v269, 112
    %v1835 = vpop.permute.xlu0 %1834
    %1836 = vrot.lane.b32.xlu0 %v273, 112
    %v1837 = vpop.permute.xlu0 %1836
    %vm1838 = vcmp.lt.s32.totalorder %v292, 112
    %v1839 = vsel %vm1838, %v1831, %v1835
    %v1840 = vsel %vm1838, %v1833, %v1837
    %v1841 = vsel %vm1838, %v1827, %v1831
    %v1842 = vsel %vm1838, %v1829, %v1833
    %v1843 = vsel %vm1838, %v1823, %v1827
    %v1844 = vsel %vm1838, %v1825, %v1829
    %v1845 = vsel %vm1838, %v1835, %v1823
    %v1846 = vsel %vm1838, %v1837, %v1825
    %s1847 = scalar_lea.vmem %s7, 28
    %v1848 = vld [vmem:[%s1847] sm:$0xf]
    %v1850 = vlaneseq
    %v1851 = vshrl.u32 %v1850, 7
    %v1852 = vsub.s32 0, %v1851
    %v1853 = vrot.slane %v1848, %v1852
    %v1854 = vlaneseq
    %v1855 = vshrl.u32 %v1854, 7
    %v1856 = vsub.s32 1, %v1855
    %v1857 = vrot.slane %v1848, %v1856
    %v1858 = vlaneseq
    %v1859 = vshrl.u32 %v1858, 7
    %v1860 = vsub.s32 2, %v1859
    %v1861 = vrot.slane %v1848, %v1860
    %v1862 = vlaneseq
    %v1863 = vshrl.u32 %v1862, 7
    %v1864 = vsub.s32 3, %v1863
    %v1865 = vrot.slane %v1848, %v1864
    %v1870 = vmul.f32 %v1843, %v1853
    %v1871 = vmul.f32 %v1841, %v1857
    %v1872 = vmul.f32 %v1839, %v1861
    %v1873 = vmul.f32 %v1845, %v1865
    %v1874 = vmul.f32 %v1844, %v1853
    %v1875 = vmul.f32 %v1842, %v1857
    %v1876 = vmul.f32 %v1840, %v1861
    %v1877 = vmul.f32 %v1846, %v1865
    %s1878 = scalar_lea.vmem [#allocation2], 56
    %v1879 = vld [vmem:[%s1878] sm:$0xff]
    %v1881 = vsel %vm333, %v1879, 0
    %1883 = vmatprep.subr.mxu0 0.0
    %1884 = vmatpush1.msra.mxu0 0.0
    %1885 = vmatprep.subr.mxu0 0.0
    %1886 = vmatpush1.msra.mxu0 0.0
    %1887 = vmatprep.subr.mxu0 0.0
    %1888 = vmatpush1.msra.mxu0 0.0
    %1889 = vmatprep.subr.mxu0 0.0
    %1890 = vmatpush1.msra.mxu0 0.0
    %1891 = vmatprep.subr.mxu0 0.0
    %1892 = vmatpush1.msra.mxu0 0.0
    %1893 = vmatprep.subr.mxu0 0.0
    %1894 = vmatpush1.msra.mxu0 0.0
    %1895 = vmatprep.subr.mxu0 0.0
    %1896 = vmatpush1.msra.mxu0 0.0
    %1897 = vmatprep.subr.mxu0 0.0
    %1898 = vmatpush1.msra.mxu0 0.0
    %1899 = vmatprep.subr.mxu0 0.0
    %1900 = vmatpush1.msra.mxu0 0.0
    %1901 = vmatprep.subr.mxu0 0.0
    %1902 = vmatpush1.msra.mxu0 0.0
    %1903 = vmatprep.subr.mxu0 0.0
    %1904 = vmatpush1.msra.mxu0 0.0
    %1905 = vmatprep.subr.mxu0 0.0
    %1906 = vmatpush1.msra.mxu0 0.0
    %1907 = vmatprep.subr.mxu0 0.0
    %1908 = vmatpush1.msra.mxu0 0.0
    %1909 = vmatprep.subr.mxu0 0.0
    %1910 = vmatpush1.msra.mxu0 0.0
    %1911 = vmatprep.subr.mxu0 %v1875
    %1912 = vmatpush1.msra.mxu0 %v1874
    %1913 = vmatprep.subr.mxu0 %v1871
    %1914 = vmatpush1.msra.mxu0 %v1870
    %1915 = vmatprep.subr.mxu0 0.0
    %1916 = vmatpush2.msra.mxu0 0.0
    %1917 = vmatprep.subr.mxu0 0.0
    %1918 = vmatpush2.msra.mxu0 0.0
    %1919 = vmatprep.subr.mxu0 0.0
    %1920 = vmatpush2.msra.mxu0 0.0
    %1921 = vmatprep.subr.mxu0 0.0
    %1922 = vmatpush2.msra.mxu0 0.0
    %1923 = vmatprep.subr.mxu0 0.0
    %1924 = vmatpush2.msra.mxu0 0.0
    %1925 = vmatprep.subr.mxu0 0.0
    %1926 = vmatpush2.msra.mxu0 0.0
    %1927 = vmatprep.subr.mxu0 0.0
    %1928 = vmatpush2.msra.mxu0 0.0
    %1929 = vmatprep.subr.mxu0 0.0
    %1930 = vmatpush2.msra.mxu0 0.0
    %1931 = vmatprep.subr.mxu0 0.0
    %1932 = vmatpush2.msra.mxu0 0.0
    %1933 = vmatprep.subr.mxu0 0.0
    %1934 = vmatpush2.msra.mxu0 0.0
    %1935 = vmatprep.subr.mxu0 0.0
    %1936 = vmatpush2.msra.mxu0 0.0
    %1937 = vmatprep.subr.mxu0 0.0
    %1938 = vmatpush2.msra.mxu0 0.0
    %1939 = vmatprep.subr.mxu0 0.0
    %1940 = vmatpush2.msra.mxu0 0.0
    %1941 = vmatprep.subr.mxu0 0.0
    %1942 = vmatpush2.msra.mxu0 0.0
    %1943 = vmatprep.subr.mxu0 0.0
    %1944 = vmatpush2.msra.mxu0 0.0
    %1945 = vmatprep.subr.mxu0 0.0
    %1946 = vmatpush2.msra.mxu0 0.0
    %1947 = vmatprep.mubr.f32.mxu0 0.0
    %1948 = vmatmul.mubr.f32.gmra.mxu0 %v1881
    %v1949 = vpop.f32.mrf.mxu0
    %v1950 = vadd.f32 0.0, %v1949
    %v1951 = vpop.f32.mrf.mxu0
    %v1952 = vadd.f32 0.0, %v1951
    %1953 = vdwg.mxu0
    %1954 = vmatprep.subr.mxu0 0.0
    %1955 = vmatpush1.msra.mxu0 0.0
    %1956 = vmatprep.subr.mxu0 0.0
    %1957 = vmatpush1.msra.mxu0 0.0
    %1958 = vmatprep.subr.mxu0 0.0
    %1959 = vmatpush1.msra.mxu0 0.0
    %1960 = vmatprep.subr.mxu0 0.0
    %1961 = vmatpush1.msra.mxu0 0.0
    %1962 = vmatprep.subr.mxu0 0.0
    %1963 = vmatpush1.msra.mxu0 0.0
    %1964 = vmatprep.subr.mxu0 0.0
    %1965 = vmatpush1.msra.mxu0 0.0
    %1966 = vmatprep.subr.mxu0 0.0
    %1967 = vmatpush1.msra.mxu0 0.0
    %1968 = vmatprep.subr.mxu0 0.0
    %1969 = vmatpush1.msra.mxu0 0.0
    %1970 = vmatprep.subr.mxu0 0.0
    %1971 = vmatpush1.msra.mxu0 0.0
    %1972 = vmatprep.subr.mxu0 0.0
    %1973 = vmatpush1.msra.mxu0 0.0
    %1974 = vmatprep.subr.mxu0 0.0
    %1975 = vmatpush1.msra.mxu0 0.0
    %1976 = vmatprep.subr.mxu0 0.0
    %1977 = vmatpush1.msra.mxu0 0.0
    %1978 = vmatprep.subr.mxu0 0.0
    %1979 = vmatpush1.msra.mxu0 0.0
    %1980 = vmatprep.subr.mxu0 0.0
    %1981 = vmatpush1.msra.mxu0 0.0
    %1982 = vmatprep.subr.mxu0 %v1877
    %1983 = vmatpush1.msra.mxu0 %v1876
    %1984 = vmatprep.subr.mxu0 %v1873
    %1985 = vmatpush1.msra.mxu0 %v1872
    %1986 = vmatprep.subr.mxu0 0.0
    %1987 = vmatpush2.msra.mxu0 0.0
    %1988 = vmatprep.subr.mxu0 0.0
    %1989 = vmatpush2.msra.mxu0 0.0
    %1990 = vmatprep.subr.mxu0 0.0
    %1991 = vmatpush2.msra.mxu0 0.0
    %1992 = vmatprep.subr.mxu0 0.0
    %1993 = vmatpush2.msra.mxu0 0.0
    %1994 = vmatprep.subr.mxu0 0.0
    %1995 = vmatpush2.msra.mxu0 0.0
    %1996 = vmatprep.subr.mxu0 0.0
    %1997 = vmatpush2.msra.mxu0 0.0
    %1998 = vmatprep.subr.mxu0 0.0
    %1999 = vmatpush2.msra.mxu0 0.0
    %2000 = vmatprep.subr.mxu0 0.0
    %2001 = vmatpush2.msra.mxu0 0.0
    %2002 = vmatprep.subr.mxu0 0.0
    %2003 = vmatpush2.msra.mxu0 0.0
    %2004 = vmatprep.subr.mxu0 0.0
    %2005 = vmatpush2.msra.mxu0 0.0
    %2006 = vmatprep.subr.mxu0 0.0
    %2007 = vmatpush2.msra.mxu0 0.0
    %2008 = vmatprep.subr.mxu0 0.0
    %2009 = vmatpush2.msra.mxu0 0.0
    %2010 = vmatprep.subr.mxu0 0.0
    %2011 = vmatpush2.msra.mxu0 0.0
    %2012 = vmatprep.subr.mxu0 0.0
    %2013 = vmatpush2.msra.mxu0 0.0
    %2014 = vmatprep.subr.mxu0 0.0
    %2015 = vmatpush2.msra.mxu0 0.0
    %2016 = vmatprep.subr.mxu0 0.0
    %2017 = vmatpush2.msra.mxu0 0.0
    %2018 = vmatprep.mubr.f32.mxu0 0.0
    %2019 = vmatmul.mubr.f32.gmra.mxu0 %v1881
    %v2020 = vpop.f32.mrf.mxu0
    %v2021 = vadd.f32 0.0, %v2020
    %v2022 = vpop.f32.mrf.mxu0
    %v2023 = vadd.f32 0.0, %v2022
    %2024 = vdwg.mxu0
    %v2025 = vadd.f32 %v1818, %v1950
    %v2026 = vadd.f32 %v1819, %v1952
    %v2027 = vadd.f32 %v1820, %v2021
    %v2028 = vadd.f32 %v1821, %v2023
    %2029 = vrot.lane.b32.xlu0 %v266, 111
    %v2030 = vpop.permute.xlu0 %2029
    %2031 = vrot.lane.b32.xlu0 %v270, 111
    %v2032 = vpop.permute.xlu0 %2031
    %2033 = vrot.lane.b32.xlu0 %v267, 111
    %v2034 = vpop.permute.xlu0 %2033
    %2035 = vrot.lane.b32.xlu0 %v271, 111
    %v2036 = vpop.permute.xlu0 %2035
    %2037 = vrot.lane.b32.xlu0 %v268, 111
    %v2038 = vpop.permute.xlu0 %2037
    %2039 = vrot.lane.b32.xlu0 %v272, 111
    %v2040 = vpop.permute.xlu0 %2039
    %2041 = vrot.lane.b32.xlu0 %v269, 111
    %v2042 = vpop.permute.xlu0 %2041
    %2043 = vrot.lane.b32.xlu0 %v273, 111
    %v2044 = vpop.permute.xlu0 %2043
    %vm2045 = vcmp.lt.s32.totalorder %v292, 111
    %v2046 = vsel %vm2045, %v2038, %v2042
    %v2047 = vsel %vm2045, %v2040, %v2044
    %v2048 = vsel %vm2045, %v2034, %v2038
    %v2049 = vsel %vm2045, %v2036, %v2040
    %v2050 = vsel %vm2045, %v2030, %v2034
    %v2051 = vsel %vm2045, %v2032, %v2036
    %v2052 = vsel %vm2045, %v2042, %v2030
    %v2053 = vsel %vm2045, %v2044, %v2032
    %s2054 = scalar_lea.vmem %s7, 32
    %v2055 = vld [vmem:[%s2054] sm:$0xf]
    %v2057 = vlaneseq
    %v2058 = vshrl.u32 %v2057, 7
    %v2059 = vsub.s32 0, %v2058
    %v2060 = vrot.slane %v2055, %v2059
    %v2061 = vlaneseq
    %v2062 = vshrl.u32 %v2061, 7
    %v2063 = vsub.s32 1, %v2062
    %v2064 = vrot.slane %v2055, %v2063
    %v2065 = vlaneseq
    %v2066 = vshrl.u32 %v2065, 7
    %v2067 = vsub.s32 2, %v2066
    %v2068 = vrot.slane %v2055, %v2067
    %v2069 = vlaneseq
    %v2070 = vshrl.u32 %v2069, 7
    %v2071 = vsub.s32 3, %v2070
    %v2072 = vrot.slane %v2055, %v2071
    %v2077 = vmul.f32 %v2050, %v2060
    %v2078 = vmul.f32 %v2048, %v2064
    %v2079 = vmul.f32 %v2046, %v2068
    %v2080 = vmul.f32 %v2052, %v2072
    %v2081 = vmul.f32 %v2051, %v2060
    %v2082 = vmul.f32 %v2049, %v2064
    %v2083 = vmul.f32 %v2047, %v2068
    %v2084 = vmul.f32 %v2053, %v2072
    %s2085 = scalar_lea.vmem [#allocation2], 64
    %v2086 = vld [vmem:[%s2085] sm:$0xff]
    %v2088 = vsel %vm333, %v2086, 0
    %2090 = vmatprep.subr.mxu0 0.0
    %2091 = vmatpush1.msra.mxu0 0.0
    %2092 = vmatprep.subr.mxu0 0.0
    %2093 = vmatpush1.msra.mxu0 0.0
    %2094 = vmatprep.subr.mxu0 0.0
    %2095 = vmatpush1.msra.mxu0 0.0
    %2096 = vmatprep.subr.mxu0 0.0
    %2097 = vmatpush1.msra.mxu0 0.0
    %2098 = vmatprep.subr.mxu0 0.0
    %2099 = vmatpush1.msra.mxu0 0.0
    %2100 = vmatprep.subr.mxu0 0.0
    %2101 = vmatpush1.msra.mxu0 0.0
    %2102 = vmatprep.subr.mxu0 0.0
    %2103 = vmatpush1.msra.mxu0 0.0
    %2104 = vmatprep.subr.mxu0 0.0
    %2105 = vmatpush1.msra.mxu0 0.0
    %2106 = vmatprep.subr.mxu0 0.0
    %2107 = vmatpush1.msra.mxu0 0.0
    %2108 = vmatprep.subr.mxu0 0.0
    %2109 = vmatpush1.msra.mxu0 0.0
    %2110 = vmatprep.subr.mxu0 0.0
    %2111 = vmatpush1.msra.mxu0 0.0
    %2112 = vmatprep.subr.mxu0 0.0
    %2113 = vmatpush1.msra.mxu0 0.0
    %2114 = vmatprep.subr.mxu0 0.0
    %2115 = vmatpush1.msra.mxu0 0.0
    %2116 = vmatprep.subr.mxu0 0.0
    %2117 = vmatpush1.msra.mxu0 0.0
    %2118 = vmatprep.subr.mxu0 %v2082
    %2119 = vmatpush1.msra.mxu0 %v2081
    %2120 = vmatprep.subr.mxu0 %v2078
    %2121 = vmatpush1.msra.mxu0 %v2077
    %2122 = vmatprep.subr.mxu0 0.0
    %2123 = vmatpush2.msra.mxu0 0.0
    %2124 = vmatprep.subr.mxu0 0.0
    %2125 = vmatpush2.msra.mxu0 0.0
    %2126 = vmatprep.subr.mxu0 0.0
    %2127 = vmatpush2.msra.mxu0 0.0
    %2128 = vmatprep.subr.mxu0 0.0
    %2129 = vmatpush2.msra.mxu0 0.0
    %2130 = vmatprep.subr.mxu0 0.0
    %2131 = vmatpush2.msra.mxu0 0.0
    %2132 = vmatprep.subr.mxu0 0.0
    %2133 = vmatpush2.msra.mxu0 0.0
    %2134 = vmatprep.subr.mxu0 0.0
    %2135 = vmatpush2.msra.mxu0 0.0
    %2136 = vmatprep.subr.mxu0 0.0
    %2137 = vmatpush2.msra.mxu0 0.0
    %2138 = vmatprep.subr.mxu0 0.0
    %2139 = vmatpush2.msra.mxu0 0.0
    %2140 = vmatprep.subr.mxu0 0.0
    %2141 = vmatpush2.msra.mxu0 0.0
    %2142 = vmatprep.subr.mxu0 0.0
    %2143 = vmatpush2.msra.mxu0 0.0
    %2144 = vmatprep.subr.mxu0 0.0
    %2145 = vmatpush2.msra.mxu0 0.0
    %2146 = vmatprep.subr.mxu0 0.0
    %2147 = vmatpush2.msra.mxu0 0.0
    %2148 = vmatprep.subr.mxu0 0.0
    %2149 = vmatpush2.msra.mxu0 0.0
    %2150 = vmatprep.subr.mxu0 0.0
    %2151 = vmatpush2.msra.mxu0 0.0
    %2152 = vmatprep.subr.mxu0 0.0
    %2153 = vmatpush2.msra.mxu0 0.0
    %2154 = vmatprep.mubr.f32.mxu0 0.0
    %2155 = vmatmul.mubr.f32.gmra.mxu0 %v2088
    %v2156 = vpop.f32.mrf.mxu0
    %v2157 = vadd.f32 0.0, %v2156
    %v2158 = vpop.f32.mrf.mxu0
    %v2159 = vadd.f32 0.0, %v2158
    %2160 = vdwg.mxu0
    %2161 = vmatprep.subr.mxu0 0.0
    %2162 = vmatpush1.msra.mxu0 0.0
    %2163 = vmatprep.subr.mxu0 0.0
    %2164 = vmatpush1.msra.mxu0 0.0
    %2165 = vmatprep.subr.mxu0 0.0
    %2166 = vmatpush1.msra.mxu0 0.0
    %2167 = vmatprep.subr.mxu0 0.0
    %2168 = vmatpush1.msra.mxu0 0.0
    %2169 = vmatprep.subr.mxu0 0.0
    %2170 = vmatpush1.msra.mxu0 0.0
    %2171 = vmatprep.subr.mxu0 0.0
    %2172 = vmatpush1.msra.mxu0 0.0
    %2173 = vmatprep.subr.mxu0 0.0
    %2174 = vmatpush1.msra.mxu0 0.0
    %2175 = vmatprep.subr.mxu0 0.0
    %2176 = vmatpush1.msra.mxu0 0.0
    %2177 = vmatprep.subr.mxu0 0.0
    %2178 = vmatpush1.msra.mxu0 0.0
    %2179 = vmatprep.subr.mxu0 0.0
    %2180 = vmatpush1.msra.mxu0 0.0
    %2181 = vmatprep.subr.mxu0 0.0
    %2182 = vmatpush1.msra.mxu0 0.0
    %2183 = vmatprep.subr.mxu0 0.0
    %2184 = vmatpush1.msra.mxu0 0.0
    %2185 = vmatprep.subr.mxu0 0.0
    %2186 = vmatpush1.msra.mxu0 0.0
    %2187 = vmatprep.subr.mxu0 0.0
    %2188 = vmatpush1.msra.mxu0 0.0
    %2189 = vmatprep.subr.mxu0 %v2084
    %2190 = vmatpush1.msra.mxu0 %v2083
    %2191 = vmatprep.subr.mxu0 %v2080
    %2192 = vmatpush1.msra.mxu0 %v2079
    %2193 = vmatprep.subr.mxu0 0.0
    %2194 = vmatpush2.msra.mxu0 0.0
    %2195 = vmatprep.subr.mxu0 0.0
    %2196 = vmatpush2.msra.mxu0 0.0
    %2197 = vmatprep.subr.mxu0 0.0
    %2198 = vmatpush2.msra.mxu0 0.0
    %2199 = vmatprep.subr.mxu0 0.0
    %2200 = vmatpush2.msra.mxu0 0.0
    %2201 = vmatprep.subr.mxu0 0.0
    %2202 = vmatpush2.msra.mxu0 0.0
    %2203 = vmatprep.subr.mxu0 0.0
    %2204 = vmatpush2.msra.mxu0 0.0
    %2205 = vmatprep.subr.mxu0 0.0
    %2206 = vmatpush2.msra.mxu0 0.0
    %2207 = vmatprep.subr.mxu0 0.0
    %2208 = vmatpush2.msra.mxu0 0.0
    %2209 = vmatprep.subr.mxu0 0.0
    %2210 = vmatpush2.msra.mxu0 0.0
    %2211 = vmatprep.subr.mxu0 0.0
    %2212 = vmatpush2.msra.mxu0 0.0
    %2213 = vmatprep.subr.mxu0 0.0
    %2214 = vmatpush2.msra.mxu0 0.0
    %2215 = vmatprep.subr.mxu0 0.0
    %2216 = vmatpush2.msra.mxu0 0.0
    %2217 = vmatprep.subr.mxu0 0.0
    %2218 = vmatpush2.msra.mxu0 0.0
    %2219 = vmatprep.subr.mxu0 0.0
    %2220 = vmatpush2.msra.mxu0 0.0
    %2221 = vmatprep.subr.mxu0 0.0
    %2222 = vmatpush2.msra.mxu0 0.0
    %2223 = vmatprep.subr.mxu0 0.0
    %2224 = vmatpush2.msra.mxu0 0.0
    %2225 = vmatprep.mubr.f32.mxu0 0.0
    %2226 = vmatmul.mubr.f32.gmra.mxu0 %v2088
    %v2227 = vpop.f32.mrf.mxu0
    %v2228 = vadd.f32 0.0, %v2227
    %v2229 = vpop.f32.mrf.mxu0
    %v2230 = vadd.f32 0.0, %v2229
    %2231 = vdwg.mxu0
    %v2232 = vadd.f32 %v2025, %v2157
    %v2233 = vadd.f32 %v2026, %v2159
    %v2234 = vadd.f32 %v2027, %v2228
    %v2235 = vadd.f32 %v2028, %v2230
    %2236 = vst [vmem:[#allocation5] sm:$0xff] %v2232
    %2237 = vst [vmem:[#allocation5 + $0x8] sm:$0xff] %v2233
    %2238 = vst [vmem:[#allocation5 + $0x10] sm:$0xff] %v2234
    %2239 = vst [vmem:[#allocation5 + $0x18] sm:$0xff] %v2235
    // Predicated region
    $region38: #{tpu_custom_call.1} parent=1 // pred_check
      _
    $region39: #{tpu_custom_call.1} parent=1 // pred_check_branch
      %2241 = sbr.rel (0) target = $region41
    $region40: #{tpu_custom_call.1} parent=1 // pred_region
      %s2243 = ssub.s32 512, 512
      %2244 = vsyncadd [#allocation4], %s2243
      %s2246 = sshll.u32 [#allocation5], 4
      %s2247 = int_to_ptr.vmem [resolvable:$true] %s2246
      %2249 = dma.vmem_to_hbm [thread:$0]  %s2247, 512, %s8, [#allocation4]
    $region41: #{tpu_custom_call.1} parent=1 // pred_fallthru
      _
    // Predicated region
    $region42: #{tpu_custom_call.1} parent=1 // pred_check
      _
    $region43: #{tpu_custom_call.1} parent=1 // pred_check_branch
      %2251 = sbr.rel (0) target = $region45
    $region44: #{tpu_custom_call.1} parent=1 // pred_region
      %2252 = dma.done [#allocation4], 512
    $region45: #{tpu_custom_call.1} parent=1 // pred_fallthru
      _
    %2253 = vsyncpa [#allocation3], 1
    %2254 = vsyncpa [#allocation4], 1

</llo_original>
